<compile_context>
chip_gen: v5e
topology: v5e:2x2
jax: 0.10.0
libtpu: 0.0.40
codegen_flags: <defaults>
</compile_context>

<pallas_src>
import functools

import jax
import jax.numpy as jnp
from jax import lax
from jax.experimental import pallas as pl
from jax.experimental.pallas import tpu as pltpu

NUM_LAYERS = 3
LEAKY_SLOPE = 0.01
LN_EPS = 1e-5
MASK_FILL = -99999.0


def _round_up(x, m):
    return ((x + m - 1) // m) * m


def _layernorm(x, gamma, beta):
    mu = jnp.mean(x, axis=-1, keepdims=True)
    var = jnp.mean((x - mu) ** 2, axis=-1, keepdims=True)
    return (x - mu) * lax.rsqrt(var + LN_EPS) * gamma + beta


def _leaky_relu(x):
    return jnp.where(x >= 0, x, LEAKY_SLOPE * x)


def policy_kernel(E, H, L, D, R, MLP,
                  idx_ref, rel_ref, vec_ref, w_ref, out_ref):
    """Fused embedding gather + LSTM step + MLP + action scoring + log_softmax."""
    B = idx_ref.shape[0]
    in_pad = _round_up(max(E, H), 16)       # bf16 sublane-tile aligned section strides
    f_pad = _round_up(H + E, 16)
    m_pad = _round_up(MLP, 16)
    off_w0 = L * in_pad
    off_w1 = off_w0 + f_pad

    idx = idx_ref[...]                                      # (B, 2 + 2D) int32, one load
    rel = rel_ref[...]                                      # (R, E) f32

    # ---- in-kernel embedding gathers: one stacked one-hot matmul ------------
    ids = jnp.concatenate([idx[:, 0:1], idx[:, 1:2]], axis=0)        # (2B, 1)
    iota_r = lax.broadcasted_iota(jnp.int32, (2 * B, R), 1)
    oh = (ids == iota_r).astype(jnp.float32)                          # (2B, R)
    emb2 = jnp.dot(oh, rel, preferred_element_type=jnp.float32)       # (2B, E)
    prev = emb2[:B]                                                   # previous action embedding
    miss = emb2[B:]                                                   # missing relation embedding

    # ---- 3-layer LayerNorm-LSTM, single step, zero initial (h, c) -----------
    x = prev
    h_parts, c_parts = [], []
    in_sizes = [E] + [H] * (L - 1)
    for l in range(L):
        vec = vec_ref[l * 8:(l + 1) * 8, :4 * H]            # (8, 4H): per-layer vector rows
        b_ih, b_hh = vec[0:1, :], vec[1:2, :]
        g_ih, be_ih = vec[2:3, :], vec[3:4, :]
        g_hh, be_hh = vec[4:5, :], vec[5:6, :]
        g_c, be_c = vec[6:7, :H], vec[7:8, :H]

        x_in = x
        if in_sizes[l] < in_pad:                            # static; not taken when E == H
            x_in = jnp.pad(x, ((0, 0), (0, in_pad - in_sizes[l])))

        w_ih_l = w_ref[l * in_pad:(l + 1) * in_pad, :4 * H]  # (in_pad, 4H) bf16
        i2h = jnp.dot(x_in.astype(jnp.bfloat16), w_ih_l,
                      preferred_element_type=jnp.float32) + b_ih      # (B, 4H)
        i2h = _layernorm(i2h, g_ih, be_ih)
        # zero initial hidden state: h2h = 0 @ W_hh + b_hh -> LN of a constant row
        h2h = _layernorm(b_hh, g_hh, be_hh)                            # (1, 4H)
        preact = i2h + h2h                                             # (B, 4H)

        # full-vreg transcendentals (EUP slot is idle), narrow gate extracts after
        sig = jax.nn.sigmoid(preact)
        th = jnp.tanh(preact)
        i_t = sig[:, 0 * H:1 * H]
        o_t = sig[:, 2 * H:3 * H]
        g_t = th[:, 3 * H:4 * H]

        c_t = i_t * g_t                                     # f_t * c_{t-1} == 0 (zero init)
        c_t = _layernorm(c_t, g_c, be_c)
        h_t = o_t * jnp.tanh(c_t)
        h_parts.append(h_t)
        c_parts.append(c_t)
        x = h_t

    # ---- MLP head (dropout == identity, eval mode) ---------------------------
    feat = jnp.concatenate([x, miss], axis=-1)              # (B, H + E)
    if (H + E) < f_pad:                                     # static
        feat = jnp.pad(feat, ((0, 0), (0, f_pad - (H + E))))
    vmlp = vec_ref[L * 8:L * 8 + 2, :]
    b0 = vmlp[0:1, :MLP]
    b1 = vmlp[1:2, :E]
    w0 = w_ref[off_w0:off_w0 + f_pad, :MLP]
    w1 = w_ref[off_w1:off_w1 + m_pad, :E]
    y = jnp.dot(feat.astype(jnp.bfloat16), w0, preferred_element_type=jnp.float32) + b0
    y = _leaky_relu(y)
    if MLP < m_pad:                                         # static
        y = jnp.pad(y, ((0, 0), (0, m_pad - MLP)))
    y = jnp.dot(y.astype(jnp.bfloat16), w1, preferred_element_type=jnp.float32) + b1
    y = _leaky_relu(y)                                      # (B, E)

    # ---- score available actions: einsum('ijk,ik->ij') where the j-th row of
    #      a_matrix is rel_emb[avail[b, j]]  ==  proj[b, avail[b, j]] ----------
    proj = lax.dot_general(y, rel, (((1,), (1,)), ((), ())),
                           preferred_element_type=jnp.float32)         # (B, R)
    avail = idx[:, 2:2 + D]                                 # (B, D) int32
    scores = jnp.zeros((B, D), jnp.float32)
    for r in range(R):                                      # static unroll; R is tiny
        scores = scores + jnp.where(avail == r, proj[:, r:r + 1], 0.0)

    mask = idx[:, 2 + D:2 + 2 * D]                          # (B, D) int32
    scores = jnp.where(mask > 0, scores, MASK_FILL)

    # ---- masked log_softmax ---------------------------------------------------
    m = jnp.max(scores, axis=-1, keepdims=True)
    z = scores - m
    lse = jnp.log(jnp.sum(jnp.exp(z), axis=-1, keepdims=True))
    logp = z - lse                                          # (B, D)

    # ---- single lane-dense packed store ---------------------------------------
    pieces = [logp] + h_parts + c_parts + [miss]
    used = D + 2 * L * H + E
    pad = out_ref.shape[1] - used
    if pad > 0:
        pieces.append(jnp.zeros((B, pad), jnp.float32))
    out_ref[...] = jnp.concatenate(pieces, axis=-1)


def init_params(key, hidden_size, embedding_size, mlp_size,
                num_rel, pad_rel, num_node, pad_node):
    """Builds parameters already packed into the kernel's slab layout."""
    keys = jax.random.split(key, 64)
    it = iter(keys)

    def nrm(shape, scale=0.1):
        return scale * jax.random.normal(next(it), shape, jnp.float32)

    H, E, MLP, L = hidden_size, embedding_size, mlp_size, NUM_LAYERS
    rel_emb = nrm((num_rel, E)).at[pad_rel].set(0.0)
    node_emb = nrm((num_node, E)).at[pad_node].set(0.0)     # unused (use_entities=False)

    in_pad = _round_up(max(E, H), 16)
    f_pad = _round_up(H + E, 16)
    m_pad = _round_up(MLP, 16)
    lane_w = max(4 * H, MLP, E)

    # f32 vector slab: 8 rows per LSTM layer + 2 rows of MLP biases.
    vec_slab = jnp.zeros((L * 8 + 2, lane_w), jnp.float32)
    # bf16 weight slab: stacked W_ih (per layer) + W0 + W1.
    w_slab = jnp.zeros((L * in_pad + f_pad + m_pad, lane_w), jnp.float32)
    w_hh = jnp.zeros((L, H, 4 * H), jnp.float32)            # kept for fidelity; unused (zero-state path)

    in_size = E
    for l in range(L):
        w_slab = w_slab.at[l * in_pad:l * in_pad + in_size, :4 * H].set(nrm((in_size, 4 * H)))
        w_hh = w_hh.at[l].set(nrm((H, 4 * H)))
        base = l * 8
        vec_slab = vec_slab.at[base + 0, :4 * H].set(nrm((4 * H,)))   # b_ih
        vec_slab = vec_slab.at[base + 1, :4 * H].set(nrm((4 * H,)))   # b_hh
        vec_slab = vec_slab.at[base + 2, :4 * H].set(1.0)             # LN(i2h) gamma (row 3: beta=0)
        vec_slab = vec_slab.at[base + 4, :4 * H].set(1.0)             # LN(h2h) gamma (row 5: beta=0)
        vec_slab = vec_slab.at[base + 6, :H].set(1.0)                 # LN(cell) gamma (row 7: beta=0)
        in_size = H

    off_w0 = L * in_pad
    off_w1 = off_w0 + f_pad
    w_slab = w_slab.at[off_w0:off_w0 + H + E, :MLP].set(nrm((H + E, MLP)))   # linear0 (pre-transposed)
    w_slab = w_slab.at[off_w1:off_w1 + MLP, :E].set(nrm((MLP, E)))           # linear1 (pre-transposed)
    vec_slab = vec_slab.at[L * 8 + 0, :MLP].set(nrm((MLP,)))                 # b0
    vec_slab = vec_slab.at[L * 8 + 1, :E].set(nrm((E,)))                     # b1

    return dict(
        rel_emb=rel_emb, node_emb=node_emb,
        vec_slab=vec_slab,
        w_slab=w_slab.astype(jnp.bfloat16),
        w_hh=w_hh.astype(jnp.bfloat16),
    )


def policy_forward(hidden_size, mlp_size, params, actions, states,
                   available_actions, padding_mask, sample_key):
    """Mirrors PolicyNetwork.forward (use_entities=False, hidden_state=None path)."""
    rel_emb = params["rel_emb"]
    R, E = rel_emb.shape
    H, MLP = hidden_size, mlp_size
    L = (params["vec_slab"].shape[0] - 2) // 8
    B, D = available_actions.shape[0], available_actions.shape[1]

    # Pack all small integer side inputs into one int32 slab:
    # [prev action id | missing relation id | D available relation ids | D mask bits]
    idx_packed = jnp.concatenate([
        actions[:, 0:1], states[:, 2:3],
        available_actions[:, :, 0],
        padding_mask.astype(jnp.int32),
    ], axis=-1).astype(jnp.int32)                            # (B, 2 + 2D)

    used = D + 2 * L * H + E
    w_out = max(128, _round_up(used, 128))                   # lane-dense packed output width

    kernel = functools.partial(policy_kernel, E, H, L, D, R, MLP)
    packed = pl.pallas_call(
        kernel,
        out_shape=jax.ShapeDtypeStruct((B, w_out), jnp.float32),
        in_specs=[pl.BlockSpec(memory_space=pltpu.MemorySpace.VMEM)] * 4,
        out_specs=pl.BlockSpec(memory_space=pltpu.MemorySpace.VMEM),
    )(idx_packed, rel_emb, params["vec_slab"], params["w_slab"])

    # Unpack the lane-dense output slab.
    logits = packed[:, :D]
    h_all = packed[:, D:D + L * H].reshape(B, L, H).transpose(1, 0, 2)            # (L, B, H)
    c_all = packed[:, D + L * H:D + 2 * L * H].reshape(B, L, H).transpose(1, 0, 2)
    miss = packed[:, D + 2 * L * H:D + 2 * L * H + E]                              # (B, E)

    # torch.multinomial(softmax(x), 1) == categorical over the (masked) logits.
    sampled = jax.random.categorical(sample_key, logits, axis=-1)[:, None]         # (B, 1)
    # NLLLoss(reduction='none') on log-probabilities.
    loss = -jnp.take_along_axis(logits, sampled, axis=1)[:, 0]                     # (B,)

    hidden_state = [(h_all[l][None], c_all[l][None]) for l in range(L)]            # (1, B, H) each
    missing_relation_embeddings = miss[None]                                       # (1, B, E)
    return logits, loss, sampled, hidden_state, missing_relation_embeddings


if __name__ == "__main__":
    key = jax.random.PRNGKey(0)
    k_param, k_act, k_state, k_av, k_mask, k_sample = jax.random.split(key, 6)

    B, D = 8, 8             # batch, max_degree
    E, H, MLP = 32, 32, 64  # embedding_size, hidden_size, mlp_size
    NUM_REL, NUM_NODE = 16, 16
    PAD_REL, PAD_NODE = 0, 0

    params = init_params(k_param, H, E, MLP, NUM_REL, PAD_REL, NUM_NODE, PAD_NODE)

    actions = jax.random.randint(k_act, (B, 2), 1, NUM_REL, jnp.int32)
    states = jax.random.randint(k_state, (B, 3), 1, NUM_REL, jnp.int32)
    available_actions = jax.random.randint(k_av, (B, D, 2), 1, NUM_REL, jnp.int32)
    padding_mask = jax.random.bernoulli(k_mask, 0.8, (B, D))
    padding_mask = padding_mask.at[:, 0].set(True)   # at least one valid action per row

    fwd = jax.jit(functools.partial(policy_forward, H, MLP))
    logits, loss, sampled, hidden_state, miss_emb = fwd(
        params, actions, states, available_actions, padding_mask, k_sample)
    jax.block_until_ready((logits, loss, sampled, miss_emb))

    assert logits.shape == (B, D) and loss.shape == (B,) and sampled.shape == (B, 1)
    assert miss_emb.shape == (1, B, E)
    assert len(hidden_state) == NUM_LAYERS and hidden_state[0][0].shape == (1, B, H)
    # log_softmax invariant: each row's probabilities sum to 1.
    row_lse = jnp.log(jnp.sum(jnp.exp(logits), axis=-1))
    assert bool(jnp.all(jnp.abs(row_lse) < 1e-3))
    print("KERNEL_OK")
</pallas_src>

<mosaic_0001>
module attributes {stable_mosaic.version = 11 : i64} {
  func.func @policy_kernel(%arg0: memref<8x18xi32, #tpu.memory_space<vmem>>, %arg1: memref<16x32xf32, #tpu.memory_space<vmem>>, %arg2: memref<26x128xf32, #tpu.memory_space<vmem>>, %arg3: memref<224x128xbf16, #tpu.memory_space<vmem>>, %arg4: memref<8x256xf32, #tpu.memory_space<vmem>>) attributes {dimension_semantics = [], scalar_prefetch = 0 : i64, scratch_operands = 0 : i64, tpu.core_type = #tpu.core_type<tc>} {
    %c0 = arith.constant 0 : index
    %c0_0 = arith.constant 0 : index
    %0 = vector.load %arg0[%c0, %c0_0] : memref<8x18xi32, #tpu.memory_space<vmem>>, vector<8x18xi32>
    %c0_1 = arith.constant 0 : index
    %c0_2 = arith.constant 0 : index
    %1 = vector.load %arg1[%c0_1, %c0_2] : memref<16x32xf32, #tpu.memory_space<vmem>>, vector<16x32xf32>
    %2 = vector.extract_strided_slice %0 {offsets = [0, 0], sizes = [8, 1], strides = [1, 1]} : vector<8x18xi32> to vector<8x1xi32>
    %3 = vector.extract_strided_slice %0 {offsets = [0, 1], sizes = [8, 1], strides = [1, 1]} : vector<8x18xi32> to vector<8x1xi32>
    %4 = tpu.concatenate %2, %3 in 0 : vector<8x1xi32>, vector<8x1xi32> -> vector<16x1xi32>
    %5 = tpu.iota {dimensions = array<i32: 1>} : vector<16x16xi32>
    %6 = vector.broadcast %4 : vector<16x1xi32> to vector<16x16xi32>
    %7 = arith.cmpi eq, %6, %5 : vector<16x16xi32>
    %8 = arith.extui %7 : vector<16x16xi1> to vector<16x16xi32>
    %9 = arith.sitofp %8 : vector<16x16xi32> to vector<16x16xf32>
    %cst = arith.constant dense<0.000000e+00> : vector<16x32xf32>
    %10 = tpu.matmul %9, %1, %cst {dimension_numbers = #tpu.dot_dimension_numbers<[1], [0], [0], [1], [0, 0, 1, 1], [], []>} : vector<16x16xf32>, vector<16x32xf32>, vector<16x32xf32> -> vector<16x32xf32>
    %11 = vector.extract_strided_slice %10 {offsets = [0, 0], sizes = [8, 32], strides = [1, 1]} : vector<16x32xf32> to vector<8x32xf32>
    %12 = vector.extract_strided_slice %10 {offsets = [8, 0], sizes = [8, 32], strides = [1, 1]} : vector<16x32xf32> to vector<8x32xf32>
    %c0_3 = arith.constant 0 : index
    %c0_4 = arith.constant 0 : index
    %13 = vector.load %arg2[%c0_3, %c0_4] : memref<26x128xf32, #tpu.memory_space<vmem>>, vector<8x128xf32>
    %14 = vector.extract_strided_slice %13 {offsets = [0, 0], sizes = [1, 128], strides = [1, 1]} : vector<8x128xf32> to vector<1x128xf32>
    %15 = vector.extract_strided_slice %13 {offsets = [1, 0], sizes = [1, 128], strides = [1, 1]} : vector<8x128xf32> to vector<1x128xf32>
    %16 = vector.extract_strided_slice %13 {offsets = [2, 0], sizes = [1, 128], strides = [1, 1]} : vector<8x128xf32> to vector<1x128xf32>
    %17 = vector.extract_strided_slice %13 {offsets = [3, 0], sizes = [1, 128], strides = [1, 1]} : vector<8x128xf32> to vector<1x128xf32>
    %18 = vector.extract_strided_slice %13 {offsets = [4, 0], sizes = [1, 128], strides = [1, 1]} : vector<8x128xf32> to vector<1x128xf32>
    %19 = vector.extract_strided_slice %13 {offsets = [5, 0], sizes = [1, 128], strides = [1, 1]} : vector<8x128xf32> to vector<1x128xf32>
    %20 = vector.extract_strided_slice %13 {offsets = [6, 0], sizes = [1, 32], strides = [1, 1]} : vector<8x128xf32> to vector<1x32xf32>
    %21 = vector.extract_strided_slice %13 {offsets = [7, 0], sizes = [1, 32], strides = [1, 1]} : vector<8x128xf32> to vector<1x32xf32>
    %c0_5 = arith.constant 0 : index
    %c0_6 = arith.constant 0 : index
    %22 = vector.load %arg3[%c0_5, %c0_6] : memref<224x128xbf16, #tpu.memory_space<vmem>>, vector<32x128xbf16>
    %23 = arith.truncf %11 : vector<8x32xf32> to vector<8x32xbf16>
    %cst_7 = arith.constant dense<0.000000e+00> : vector<8x128xf32>
    %24 = tpu.matmul %23, %22, %cst_7 {dimension_numbers = #tpu.dot_dimension_numbers<[1], [0], [0], [1], [0, 0, 1, 1], [], []>} : vector<8x32xbf16>, vector<32x128xbf16>, vector<8x128xf32> -> vector<8x128xf32>
    %25 = vector.broadcast %14 : vector<1x128xf32> to vector<8x128xf32>
    %26 = arith.addf %24, %25 : vector<8x128xf32>
    %cst_8 = arith.constant dense<0.000000e+00> : vector<8xf32>
    %27 = vector.multi_reduction <add>, %26, %cst_8 [1] : vector<8x128xf32> to vector<8xf32>
    %28 = vector.shape_cast %27 : vector<8xf32> to vector<8x1xf32>
    %cst_9 = arith.constant 1.280000e+02 : f32
    %29 = vector.broadcast %cst_9 : f32 to vector<8x1xf32>
    %30 = arith.divf %28, %29 : vector<8x1xf32>
    %31 = vector.broadcast %30 : vector<8x1xf32> to vector<8x128xf32>
    %32 = arith.subf %26, %31 : vector<8x128xf32>
    %33 = arith.mulf %32, %32 : vector<8x128xf32>
    %cst_10 = arith.constant dense<0.000000e+00> : vector<8xf32>
    %34 = vector.multi_reduction <add>, %33, %cst_10 [1] : vector<8x128xf32> to vector<8xf32>
    %35 = vector.shape_cast %34 : vector<8xf32> to vector<8x1xf32>
    %cst_11 = arith.constant 1.280000e+02 : f32
    %36 = vector.broadcast %cst_11 : f32 to vector<8x1xf32>
    %37 = arith.divf %35, %36 : vector<8x1xf32>
    %38 = vector.broadcast %30 : vector<8x1xf32> to vector<8x128xf32>
    %39 = arith.subf %26, %38 : vector<8x128xf32>
    %cst_12 = arith.constant 9.99999974E-6 : f32
    %40 = vector.broadcast %cst_12 : f32 to vector<8x1xf32>
    %41 = arith.addf %37, %40 : vector<8x1xf32>
    %42 = math.rsqrt %41 : vector<8x1xf32>
    %43 = vector.broadcast %42 : vector<8x1xf32> to vector<8x128xf32>
    %44 = arith.mulf %39, %43 : vector<8x128xf32>
    %45 = vector.broadcast %16 : vector<1x128xf32> to vector<8x128xf32>
    %46 = arith.mulf %44, %45 : vector<8x128xf32>
    %47 = vector.broadcast %17 : vector<1x128xf32> to vector<8x128xf32>
    %48 = arith.addf %46, %47 : vector<8x128xf32>
    %cst_13 = arith.constant dense<0.000000e+00> : vector<1xf32>
    %49 = vector.multi_reduction <add>, %15, %cst_13 [1] : vector<1x128xf32> to vector<1xf32>
    %50 = vector.shape_cast %49 : vector<1xf32> to vector<1x1xf32>
    %cst_14 = arith.constant 1.280000e+02 : f32
    %51 = vector.broadcast %cst_14 : f32 to vector<1x1xf32>
    %52 = arith.divf %50, %51 : vector<1x1xf32>
    %53 = vector.broadcast %52 : vector<1x1xf32> to vector<1x128xf32>
    %54 = arith.subf %15, %53 : vector<1x128xf32>
    %55 = arith.mulf %54, %54 : vector<1x128xf32>
    %cst_15 = arith.constant dense<0.000000e+00> : vector<1xf32>
    %56 = vector.multi_reduction <add>, %55, %cst_15 [1] : vector<1x128xf32> to vector<1xf32>
    %57 = vector.shape_cast %56 : vector<1xf32> to vector<1x1xf32>
    %cst_16 = arith.constant 1.280000e+02 : f32
    %58 = vector.broadcast %cst_16 : f32 to vector<1x1xf32>
    %59 = arith.divf %57, %58 : vector<1x1xf32>
    %60 = vector.broadcast %52 : vector<1x1xf32> to vector<1x128xf32>
    %61 = arith.subf %15, %60 : vector<1x128xf32>
    %cst_17 = arith.constant 9.99999974E-6 : f32
    %62 = vector.broadcast %cst_17 : f32 to vector<1x1xf32>
    %63 = arith.addf %59, %62 : vector<1x1xf32>
    %64 = math.rsqrt %63 : vector<1x1xf32>
    %65 = vector.broadcast %64 : vector<1x1xf32> to vector<1x128xf32>
    %66 = arith.mulf %61, %65 : vector<1x128xf32>
    %67 = arith.mulf %66, %18 : vector<1x128xf32>
    %68 = arith.addf %67, %19 : vector<1x128xf32>
    %69 = vector.broadcast %68 : vector<1x128xf32> to vector<8x128xf32>
    %70 = arith.addf %48, %69 : vector<8x128xf32>
    %71 = arith.negf %70 : vector<8x128xf32>
    %72 = math.exp %71 : vector<8x128xf32>
    %cst_18 = arith.constant 1.000000e+00 : f32
    %73 = vector.broadcast %cst_18 : f32 to vector<8x128xf32>
    %74 = arith.addf %73, %72 : vector<8x128xf32>
    %75 = arith.divf %73, %74 : vector<8x128xf32>
    %76 = math.tanh %70 : vector<8x128xf32>
    %77 = vector.extract_strided_slice %75 {offsets = [0, 0], sizes = [8, 32], strides = [1, 1]} : vector<8x128xf32> to vector<8x32xf32>
    %78 = vector.extract_strided_slice %75 {offsets = [0, 64], sizes = [8, 32], strides = [1, 1]} : vector<8x128xf32> to vector<8x32xf32>
    %79 = vector.extract_strided_slice %76 {offsets = [0, 96], sizes = [8, 32], strides = [1, 1]} : vector<8x128xf32> to vector<8x32xf32>
    %80 = arith.mulf %77, %79 : vector<8x32xf32>
    %cst_19 = arith.constant dense<0.000000e+00> : vector<8xf32>
    %81 = vector.multi_reduction <add>, %80, %cst_19 [1] : vector<8x32xf32> to vector<8xf32>
    %82 = vector.shape_cast %81 : vector<8xf32> to vector<8x1xf32>
    %cst_20 = arith.constant 3.200000e+01 : f32
    %83 = vector.broadcast %cst_20 : f32 to vector<8x1xf32>
    %84 = arith.divf %82, %83 : vector<8x1xf32>
    %85 = vector.broadcast %84 : vector<8x1xf32> to vector<8x32xf32>
    %86 = arith.subf %80, %85 : vector<8x32xf32>
    %87 = arith.mulf %86, %86 : vector<8x32xf32>
    %cst_21 = arith.constant dense<0.000000e+00> : vector<8xf32>
    %88 = vector.multi_reduction <add>, %87, %cst_21 [1] : vector<8x32xf32> to vector<8xf32>
    %89 = vector.shape_cast %88 : vector<8xf32> to vector<8x1xf32>
    %cst_22 = arith.constant 3.200000e+01 : f32
    %90 = vector.broadcast %cst_22 : f32 to vector<8x1xf32>
    %91 = arith.divf %89, %90 : vector<8x1xf32>
    %92 = vector.broadcast %84 : vector<8x1xf32> to vector<8x32xf32>
    %93 = arith.subf %80, %92 : vector<8x32xf32>
    %cst_23 = arith.constant 9.99999974E-6 : f32
    %94 = vector.broadcast %cst_23 : f32 to vector<8x1xf32>
    %95 = arith.addf %91, %94 : vector<8x1xf32>
    %96 = math.rsqrt %95 : vector<8x1xf32>
    %97 = vector.broadcast %96 : vector<8x1xf32> to vector<8x32xf32>
    %98 = arith.mulf %93, %97 : vector<8x32xf32>
    %99 = vector.broadcast %20 : vector<1x32xf32> to vector<8x32xf32>
    %100 = arith.mulf %98, %99 : vector<8x32xf32>
    %101 = vector.broadcast %21 : vector<1x32xf32> to vector<8x32xf32>
    %102 = arith.addf %100, %101 : vector<8x32xf32>
    %103 = math.tanh %102 : vector<8x32xf32>
    %104 = arith.mulf %78, %103 : vector<8x32xf32>
    %c8 = arith.constant 8 : index
    %c0_24 = arith.constant 0 : index
    %105 = vector.load %arg2[%c8, %c0_24] : memref<26x128xf32, #tpu.memory_space<vmem>>, vector<8x128xf32>
    %106 = vector.extract_strided_slice %105 {offsets = [0, 0], sizes = [1, 128], strides = [1, 1]} : vector<8x128xf32> to vector<1x128xf32>
    %107 = vector.extract_strided_slice %105 {offsets = [1, 0], sizes = [1, 128], strides = [1, 1]} : vector<8x128xf32> to vector<1x128xf32>
    %108 = vector.extract_strided_slice %105 {offsets = [2, 0], sizes = [1, 128], strides = [1, 1]} : vector<8x128xf32> to vector<1x128xf32>
    %109 = vector.extract_strided_slice %105 {offsets = [3, 0], sizes = [1, 128], strides = [1, 1]} : vector<8x128xf32> to vector<1x128xf32>
    %110 = vector.extract_strided_slice %105 {offsets = [4, 0], sizes = [1, 128], strides = [1, 1]} : vector<8x128xf32> to vector<1x128xf32>
    %111 = vector.extract_strided_slice %105 {offsets = [5, 0], sizes = [1, 128], strides = [1, 1]} : vector<8x128xf32> to vector<1x128xf32>
    %112 = vector.extract_strided_slice %105 {offsets = [6, 0], sizes = [1, 32], strides = [1, 1]} : vector<8x128xf32> to vector<1x32xf32>
    %113 = vector.extract_strided_slice %105 {offsets = [7, 0], sizes = [1, 32], strides = [1, 1]} : vector<8x128xf32> to vector<1x32xf32>
    %c32 = arith.constant 32 : index
    %c0_25 = arith.constant 0 : index
    %114 = vector.load %arg3[%c32, %c0_25] : memref<224x128xbf16, #tpu.memory_space<vmem>>, vector<32x128xbf16>
    %115 = arith.truncf %104 : vector<8x32xf32> to vector<8x32xbf16>
    %cst_26 = arith.constant dense<0.000000e+00> : vector<8x128xf32>
    %116 = tpu.matmul %115, %114, %cst_26 {dimension_numbers = #tpu.dot_dimension_numbers<[1], [0], [0], [1], [0, 0, 1, 1], [], []>} : vector<8x32xbf16>, vector<32x128xbf16>, vector<8x128xf32> -> vector<8x128xf32>
    %117 = vector.broadcast %106 : vector<1x128xf32> to vector<8x128xf32>
    %118 = arith.addf %116, %117 : vector<8x128xf32>
    %cst_27 = arith.constant dense<0.000000e+00> : vector<8xf32>
    %119 = vector.multi_reduction <add>, %118, %cst_27 [1] : vector<8x128xf32> to vector<8xf32>
    %120 = vector.shape_cast %119 : vector<8xf32> to vector<8x1xf32>
    %cst_28 = arith.constant 1.280000e+02 : f32
    %121 = vector.broadcast %cst_28 : f32 to vector<8x1xf32>
    %122 = arith.divf %120, %121 : vector<8x1xf32>
    %123 = vector.broadcast %122 : vector<8x1xf32> to vector<8x128xf32>
    %124 = arith.subf %118, %123 : vector<8x128xf32>
    %125 = arith.mulf %124, %124 : vector<8x128xf32>
    %cst_29 = arith.constant dense<0.000000e+00> : vector<8xf32>
    %126 = vector.multi_reduction <add>, %125, %cst_29 [1] : vector<8x128xf32> to vector<8xf32>
    %127 = vector.shape_cast %126 : vector<8xf32> to vector<8x1xf32>
    %cst_30 = arith.constant 1.280000e+02 : f32
    %128 = vector.broadcast %cst_30 : f32 to vector<8x1xf32>
    %129 = arith.divf %127, %128 : vector<8x1xf32>
    %130 = vector.broadcast %122 : vector<8x1xf32> to vector<8x128xf32>
    %131 = arith.subf %118, %130 : vector<8x128xf32>
    %cst_31 = arith.constant 9.99999974E-6 : f32
    %132 = vector.broadcast %cst_31 : f32 to vector<8x1xf32>
    %133 = arith.addf %129, %132 : vector<8x1xf32>
    %134 = math.rsqrt %133 : vector<8x1xf32>
    %135 = vector.broadcast %134 : vector<8x1xf32> to vector<8x128xf32>
    %136 = arith.mulf %131, %135 : vector<8x128xf32>
    %137 = vector.broadcast %108 : vector<1x128xf32> to vector<8x128xf32>
    %138 = arith.mulf %136, %137 : vector<8x128xf32>
    %139 = vector.broadcast %109 : vector<1x128xf32> to vector<8x128xf32>
    %140 = arith.addf %138, %139 : vector<8x128xf32>
    %cst_32 = arith.constant dense<0.000000e+00> : vector<1xf32>
    %141 = vector.multi_reduction <add>, %107, %cst_32 [1] : vector<1x128xf32> to vector<1xf32>
    %142 = vector.shape_cast %141 : vector<1xf32> to vector<1x1xf32>
    %cst_33 = arith.constant 1.280000e+02 : f32
    %143 = vector.broadcast %cst_33 : f32 to vector<1x1xf32>
    %144 = arith.divf %142, %143 : vector<1x1xf32>
    %145 = vector.broadcast %144 : vector<1x1xf32> to vector<1x128xf32>
    %146 = arith.subf %107, %145 : vector<1x128xf32>
    %147 = arith.mulf %146, %146 : vector<1x128xf32>
    %cst_34 = arith.constant dense<0.000000e+00> : vector<1xf32>
    %148 = vector.multi_reduction <add>, %147, %cst_34 [1] : vector<1x128xf32> to vector<1xf32>
    %149 = vector.shape_cast %148 : vector<1xf32> to vector<1x1xf32>
    %cst_35 = arith.constant 1.280000e+02 : f32
    %150 = vector.broadcast %cst_35 : f32 to vector<1x1xf32>
    %151 = arith.divf %149, %150 : vector<1x1xf32>
    %152 = vector.broadcast %144 : vector<1x1xf32> to vector<1x128xf32>
    %153 = arith.subf %107, %152 : vector<1x128xf32>
    %cst_36 = arith.constant 9.99999974E-6 : f32
    %154 = vector.broadcast %cst_36 : f32 to vector<1x1xf32>
    %155 = arith.addf %151, %154 : vector<1x1xf32>
    %156 = math.rsqrt %155 : vector<1x1xf32>
    %157 = vector.broadcast %156 : vector<1x1xf32> to vector<1x128xf32>
    %158 = arith.mulf %153, %157 : vector<1x128xf32>
    %159 = arith.mulf %158, %110 : vector<1x128xf32>
    %160 = arith.addf %159, %111 : vector<1x128xf32>
    %161 = vector.broadcast %160 : vector<1x128xf32> to vector<8x128xf32>
    %162 = arith.addf %140, %161 : vector<8x128xf32>
    %163 = arith.negf %162 : vector<8x128xf32>
    %164 = math.exp %163 : vector<8x128xf32>
    %cst_37 = arith.constant 1.000000e+00 : f32
    %165 = vector.broadcast %cst_37 : f32 to vector<8x128xf32>
    %166 = arith.addf %165, %164 : vector<8x128xf32>
    %167 = arith.divf %165, %166 : vector<8x128xf32>
    %168 = math.tanh %162 : vector<8x128xf32>
    %169 = vector.extract_strided_slice %167 {offsets = [0, 0], sizes = [8, 32], strides = [1, 1]} : vector<8x128xf32> to vector<8x32xf32>
    %170 = vector.extract_strided_slice %167 {offsets = [0, 64], sizes = [8, 32], strides = [1, 1]} : vector<8x128xf32> to vector<8x32xf32>
    %171 = vector.extract_strided_slice %168 {offsets = [0, 96], sizes = [8, 32], strides = [1, 1]} : vector<8x128xf32> to vector<8x32xf32>
    %172 = arith.mulf %169, %171 : vector<8x32xf32>
    %cst_38 = arith.constant dense<0.000000e+00> : vector<8xf32>
    %173 = vector.multi_reduction <add>, %172, %cst_38 [1] : vector<8x32xf32> to vector<8xf32>
    %174 = vector.shape_cast %173 : vector<8xf32> to vector<8x1xf32>
    %cst_39 = arith.constant 3.200000e+01 : f32
    %175 = vector.broadcast %cst_39 : f32 to vector<8x1xf32>
    %176 = arith.divf %174, %175 : vector<8x1xf32>
    %177 = vector.broadcast %176 : vector<8x1xf32> to vector<8x32xf32>
    %178 = arith.subf %172, %177 : vector<8x32xf32>
    %179 = arith.mulf %178, %178 : vector<8x32xf32>
    %cst_40 = arith.constant dense<0.000000e+00> : vector<8xf32>
    %180 = vector.multi_reduction <add>, %179, %cst_40 [1] : vector<8x32xf32> to vector<8xf32>
    %181 = vector.shape_cast %180 : vector<8xf32> to vector<8x1xf32>
    %cst_41 = arith.constant 3.200000e+01 : f32
    %182 = vector.broadcast %cst_41 : f32 to vector<8x1xf32>
    %183 = arith.divf %181, %182 : vector<8x1xf32>
    %184 = vector.broadcast %176 : vector<8x1xf32> to vector<8x32xf32>
    %185 = arith.subf %172, %184 : vector<8x32xf32>
    %cst_42 = arith.constant 9.99999974E-6 : f32
    %186 = vector.broadcast %cst_42 : f32 to vector<8x1xf32>
    %187 = arith.addf %183, %186 : vector<8x1xf32>
    %188 = math.rsqrt %187 : vector<8x1xf32>
    %189 = vector.broadcast %188 : vector<8x1xf32> to vector<8x32xf32>
    %190 = arith.mulf %185, %189 : vector<8x32xf32>
    %191 = vector.broadcast %112 : vector<1x32xf32> to vector<8x32xf32>
    %192 = arith.mulf %190, %191 : vector<8x32xf32>
    %193 = vector.broadcast %113 : vector<1x32xf32> to vector<8x32xf32>
    %194 = arith.addf %192, %193 : vector<8x32xf32>
    %195 = math.tanh %194 : vector<8x32xf32>
    %196 = arith.mulf %170, %195 : vector<8x32xf32>
    %c16 = arith.constant 16 : index
    %c0_43 = arith.constant 0 : index
    %197 = vector.load %arg2[%c16, %c0_43] : memref<26x128xf32, #tpu.memory_space<vmem>>, vector<8x128xf32>
    %198 = vector.extract_strided_slice %197 {offsets = [0, 0], sizes = [1, 128], strides = [1, 1]} : vector<8x128xf32> to vector<1x128xf32>
    %199 = vector.extract_strided_slice %197 {offsets = [1, 0], sizes = [1, 128], strides = [1, 1]} : vector<8x128xf32> to vector<1x128xf32>
    %200 = vector.extract_strided_slice %197 {offsets = [2, 0], sizes = [1, 128], strides = [1, 1]} : vector<8x128xf32> to vector<1x128xf32>
    %201 = vector.extract_strided_slice %197 {offsets = [3, 0], sizes = [1, 128], strides = [1, 1]} : vector<8x128xf32> to vector<1x128xf32>
    %202 = vector.extract_strided_slice %197 {offsets = [4, 0], sizes = [1, 128], strides = [1, 1]} : vector<8x128xf32> to vector<1x128xf32>
    %203 = vector.extract_strided_slice %197 {offsets = [5, 0], sizes = [1, 128], strides = [1, 1]} : vector<8x128xf32> to vector<1x128xf32>
    %204 = vector.extract_strided_slice %197 {offsets = [6, 0], sizes = [1, 32], strides = [1, 1]} : vector<8x128xf32> to vector<1x32xf32>
    %205 = vector.extract_strided_slice %197 {offsets = [7, 0], sizes = [1, 32], strides = [1, 1]} : vector<8x128xf32> to vector<1x32xf32>
    %c64 = arith.constant 64 : index
    %c0_44 = arith.constant 0 : index
    %206 = vector.load %arg3[%c64, %c0_44] : memref<224x128xbf16, #tpu.memory_space<vmem>>, vector<32x128xbf16>
    %207 = arith.truncf %196 : vector<8x32xf32> to vector<8x32xbf16>
    %cst_45 = arith.constant dense<0.000000e+00> : vector<8x128xf32>
    %208 = tpu.matmul %207, %206, %cst_45 {dimension_numbers = #tpu.dot_dimension_numbers<[1], [0], [0], [1], [0, 0, 1, 1], [], []>} : vector<8x32xbf16>, vector<32x128xbf16>, vector<8x128xf32> -> vector<8x128xf32>
    %209 = vector.broadcast %198 : vector<1x128xf32> to vector<8x128xf32>
    %210 = arith.addf %208, %209 : vector<8x128xf32>
    %cst_46 = arith.constant dense<0.000000e+00> : vector<8xf32>
    %211 = vector.multi_reduction <add>, %210, %cst_46 [1] : vector<8x128xf32> to vector<8xf32>
    %212 = vector.shape_cast %211 : vector<8xf32> to vector<8x1xf32>
    %cst_47 = arith.constant 1.280000e+02 : f32
    %213 = vector.broadcast %cst_47 : f32 to vector<8x1xf32>
    %214 = arith.divf %212, %213 : vector<8x1xf32>
    %215 = vector.broadcast %214 : vector<8x1xf32> to vector<8x128xf32>
    %216 = arith.subf %210, %215 : vector<8x128xf32>
    %217 = arith.mulf %216, %216 : vector<8x128xf32>
    %cst_48 = arith.constant dense<0.000000e+00> : vector<8xf32>
    %218 = vector.multi_reduction <add>, %217, %cst_48 [1] : vector<8x128xf32> to vector<8xf32>
    %219 = vector.shape_cast %218 : vector<8xf32> to vector<8x1xf32>
    %cst_49 = arith.constant 1.280000e+02 : f32
    %220 = vector.broadcast %cst_49 : f32 to vector<8x1xf32>
    %221 = arith.divf %219, %220 : vector<8x1xf32>
    %222 = vector.broadcast %214 : vector<8x1xf32> to vector<8x128xf32>
    %223 = arith.subf %210, %222 : vector<8x128xf32>
    %cst_50 = arith.constant 9.99999974E-6 : f32
    %224 = vector.broadcast %cst_50 : f32 to vector<8x1xf32>
    %225 = arith.addf %221, %224 : vector<8x1xf32>
    %226 = math.rsqrt %225 : vector<8x1xf32>
    %227 = vector.broadcast %226 : vector<8x1xf32> to vector<8x128xf32>
    %228 = arith.mulf %223, %227 : vector<8x128xf32>
    %229 = vector.broadcast %200 : vector<1x128xf32> to vector<8x128xf32>
    %230 = arith.mulf %228, %229 : vector<8x128xf32>
    %231 = vector.broadcast %201 : vector<1x128xf32> to vector<8x128xf32>
    %232 = arith.addf %230, %231 : vector<8x128xf32>
    %cst_51 = arith.constant dense<0.000000e+00> : vector<1xf32>
    %233 = vector.multi_reduction <add>, %199, %cst_51 [1] : vector<1x128xf32> to vector<1xf32>
    %234 = vector.shape_cast %233 : vector<1xf32> to vector<1x1xf32>
    %cst_52 = arith.constant 1.280000e+02 : f32
    %235 = vector.broadcast %cst_52 : f32 to vector<1x1xf32>
    %236 = arith.divf %234, %235 : vector<1x1xf32>
    %237 = vector.broadcast %236 : vector<1x1xf32> to vector<1x128xf32>
    %238 = arith.subf %199, %237 : vector<1x128xf32>
    %239 = arith.mulf %238, %238 : vector<1x128xf32>
    %cst_53 = arith.constant dense<0.000000e+00> : vector<1xf32>
    %240 = vector.multi_reduction <add>, %239, %cst_53 [1] : vector<1x128xf32> to vector<1xf32>
    %241 = vector.shape_cast %240 : vector<1xf32> to vector<1x1xf32>
    %cst_54 = arith.constant 1.280000e+02 : f32
    %242 = vector.broadcast %cst_54 : f32 to vector<1x1xf32>
    %243 = arith.divf %241, %242 : vector<1x1xf32>
    %244 = vector.broadcast %236 : vector<1x1xf32> to vector<1x128xf32>
    %245 = arith.subf %199, %244 : vector<1x128xf32>
    %cst_55 = arith.constant 9.99999974E-6 : f32
    %246 = vector.broadcast %cst_55 : f32 to vector<1x1xf32>
    %247 = arith.addf %243, %246 : vector<1x1xf32>
    %248 = math.rsqrt %247 : vector<1x1xf32>
    %249 = vector.broadcast %248 : vector<1x1xf32> to vector<1x128xf32>
    %250 = arith.mulf %245, %249 : vector<1x128xf32>
    %251 = arith.mulf %250, %202 : vector<1x128xf32>
    %252 = arith.addf %251, %203 : vector<1x128xf32>
    %253 = vector.broadcast %252 : vector<1x128xf32> to vector<8x128xf32>
    %254 = arith.addf %232, %253 : vector<8x128xf32>
    %255 = arith.negf %254 : vector<8x128xf32>
    %256 = math.exp %255 : vector<8x128xf32>
    %cst_56 = arith.constant 1.000000e+00 : f32
    %257 = vector.broadcast %cst_56 : f32 to vector<8x128xf32>
    %258 = arith.addf %257, %256 : vector<8x128xf32>
    %259 = arith.divf %257, %258 : vector<8x128xf32>
    %260 = math.tanh %254 : vector<8x128xf32>
    %261 = vector.extract_strided_slice %259 {offsets = [0, 0], sizes = [8, 32], strides = [1, 1]} : vector<8x128xf32> to vector<8x32xf32>
    %262 = vector.extract_strided_slice %259 {offsets = [0, 64], sizes = [8, 32], strides = [1, 1]} : vector<8x128xf32> to vector<8x32xf32>
    %263 = vector.extract_strided_slice %260 {offsets = [0, 96], sizes = [8, 32], strides = [1, 1]} : vector<8x128xf32> to vector<8x32xf32>
    %264 = arith.mulf %261, %263 : vector<8x32xf32>
    %cst_57 = arith.constant dense<0.000000e+00> : vector<8xf32>
    %265 = vector.multi_reduction <add>, %264, %cst_57 [1] : vector<8x32xf32> to vector<8xf32>
    %266 = vector.shape_cast %265 : vector<8xf32> to vector<8x1xf32>
    %cst_58 = arith.constant 3.200000e+01 : f32
    %267 = vector.broadcast %cst_58 : f32 to vector<8x1xf32>
    %268 = arith.divf %266, %267 : vector<8x1xf32>
    %269 = vector.broadcast %268 : vector<8x1xf32> to vector<8x32xf32>
    %270 = arith.subf %264, %269 : vector<8x32xf32>
    %271 = arith.mulf %270, %270 : vector<8x32xf32>
    %cst_59 = arith.constant dense<0.000000e+00> : vector<8xf32>
    %272 = vector.multi_reduction <add>, %271, %cst_59 [1] : vector<8x32xf32> to vector<8xf32>
    %273 = vector.shape_cast %272 : vector<8xf32> to vector<8x1xf32>
    %cst_60 = arith.constant 3.200000e+01 : f32
    %274 = vector.broadcast %cst_60 : f32 to vector<8x1xf32>
    %275 = arith.divf %273, %274 : vector<8x1xf32>
    %276 = vector.broadcast %268 : vector<8x1xf32> to vector<8x32xf32>
    %277 = arith.subf %264, %276 : vector<8x32xf32>
    %cst_61 = arith.constant 9.99999974E-6 : f32
    %278 = vector.broadcast %cst_61 : f32 to vector<8x1xf32>
    %279 = arith.addf %275, %278 : vector<8x1xf32>
    %280 = math.rsqrt %279 : vector<8x1xf32>
    %281 = vector.broadcast %280 : vector<8x1xf32> to vector<8x32xf32>
    %282 = arith.mulf %277, %281 : vector<8x32xf32>
    %283 = vector.broadcast %204 : vector<1x32xf32> to vector<8x32xf32>
    %284 = arith.mulf %282, %283 : vector<8x32xf32>
    %285 = vector.broadcast %205 : vector<1x32xf32> to vector<8x32xf32>
    %286 = arith.addf %284, %285 : vector<8x32xf32>
    %287 = math.tanh %286 : vector<8x32xf32>
    %288 = arith.mulf %262, %287 : vector<8x32xf32>
    %289 = tpu.concatenate %288, %12 in 1 : vector<8x32xf32>, vector<8x32xf32> -> vector<8x64xf32>
    %c24 = arith.constant 24 : index
    %c0_62 = arith.constant 0 : index
    %290 = vector.load %arg2[%c24, %c0_62] : memref<26x128xf32, #tpu.memory_space<vmem>>, vector<2x128xf32>
    %291 = vector.extract_strided_slice %290 {offsets = [0, 0], sizes = [1, 64], strides = [1, 1]} : vector<2x128xf32> to vector<1x64xf32>
    %292 = vector.extract_strided_slice %290 {offsets = [1, 0], sizes = [1, 32], strides = [1, 1]} : vector<2x128xf32> to vector<1x32xf32>
    %c96 = arith.constant 96 : index
    %c0_63 = arith.constant 0 : index
    %293 = vector.load %arg3[%c96, %c0_63] : memref<224x128xbf16, #tpu.memory_space<vmem>>, vector<64x64xbf16>
    %c160 = arith.constant 160 : index
    %c0_64 = arith.constant 0 : index
    %294 = vector.load %arg3[%c160, %c0_64] : memref<224x128xbf16, #tpu.memory_space<vmem>>, vector<64x32xbf16>
    %295 = arith.truncf %289 : vector<8x64xf32> to vector<8x64xbf16>
    %cst_65 = arith.constant dense<0.000000e+00> : vector<8x64xf32>
    %296 = tpu.matmul %295, %293, %cst_65 {dimension_numbers = #tpu.dot_dimension_numbers<[1], [0], [0], [1], [0, 0, 1, 1], [], []>} : vector<8x64xbf16>, vector<64x64xbf16>, vector<8x64xf32> -> vector<8x64xf32>
    %297 = vector.broadcast %291 : vector<1x64xf32> to vector<8x64xf32>
    %298 = arith.addf %296, %297 : vector<8x64xf32>
    %cst_66 = arith.constant 0.000000e+00 : f32
    %299 = vector.broadcast %cst_66 : f32 to vector<8x64xf32>
    %300 = arith.cmpf oge, %298, %299 : vector<8x64xf32>
    %cst_67 = arith.constant 0.00999999977 : f32
    %301 = vector.broadcast %cst_67 : f32 to vector<8x64xf32>
    %302 = arith.mulf %301, %298 : vector<8x64xf32>
    %303 = arith.select %300, %298, %302 : vector<8x64xi1>, vector<8x64xf32>
    %304 = arith.truncf %303 : vector<8x64xf32> to vector<8x64xbf16>
    %cst_68 = arith.constant dense<0.000000e+00> : vector<8x32xf32>
    %305 = tpu.matmul %304, %294, %cst_68 {dimension_numbers = #tpu.dot_dimension_numbers<[1], [0], [0], [1], [0, 0, 1, 1], [], []>} : vector<8x64xbf16>, vector<64x32xbf16>, vector<8x32xf32> -> vector<8x32xf32>
    %306 = vector.broadcast %292 : vector<1x32xf32> to vector<8x32xf32>
    %307 = arith.addf %305, %306 : vector<8x32xf32>
    %cst_69 = arith.constant 0.000000e+00 : f32
    %308 = vector.broadcast %cst_69 : f32 to vector<8x32xf32>
    %309 = arith.cmpf oge, %307, %308 : vector<8x32xf32>
    %cst_70 = arith.constant 0.00999999977 : f32
    %310 = vector.broadcast %cst_70 : f32 to vector<8x32xf32>
    %311 = arith.mulf %310, %307 : vector<8x32xf32>
    %312 = arith.select %309, %307, %311 : vector<8x32xi1>, vector<8x32xf32>
    %cst_71 = arith.constant dense<0.000000e+00> : vector<8x16xf32>
    %313 = tpu.matmul %312, %1, %cst_71 {dimension_numbers = #tpu.dot_dimension_numbers<[1], [1], [0], [0], [0, 0, 1, 0], [], []>} : vector<8x32xf32>, vector<16x32xf32>, vector<8x16xf32> -> vector<8x16xf32>
    %314 = vector.extract_strided_slice %0 {offsets = [0, 2], sizes = [8, 8], strides = [1, 1]} : vector<8x18xi32> to vector<8x8xi32>
    %cst_72 = arith.constant 0.000000e+00 : f32
    %315 = vector.broadcast %cst_72 : f32 to vector<8x8xf32>
    %c0_i32 = arith.constant 0 : i32
    %316 = vector.broadcast %c0_i32 : i32 to vector<8x8xi32>
    %317 = arith.cmpi eq, %314, %316 : vector<8x8xi32>
    %318 = vector.extract_strided_slice %313 {offsets = [0, 0], sizes = [8, 1], strides = [1, 1]} : vector<8x16xf32> to vector<8x1xf32>
    %cst_73 = arith.constant 0.000000e+00 : f32
    %319 = vector.shape_cast %318 : vector<8x1xf32> to vector<8x1xf32>
    %320 = vector.broadcast %319 : vector<8x1xf32> to vector<8x8xf32>
    %321 = vector.broadcast %cst_73 : f32 to vector<8x8xf32>
    %322 = arith.select %317, %320, %321 : vector<8x8xi1>, vector<8x8xf32>
    %323 = arith.addf %315, %322 : vector<8x8xf32>
    %c1_i32 = arith.constant 1 : i32
    %324 = vector.broadcast %c1_i32 : i32 to vector<8x8xi32>
    %325 = arith.cmpi eq, %314, %324 : vector<8x8xi32>
    %326 = vector.extract_strided_slice %313 {offsets = [0, 1], sizes = [8, 1], strides = [1, 1]} : vector<8x16xf32> to vector<8x1xf32>
    %cst_74 = arith.constant 0.000000e+00 : f32
    %327 = vector.shape_cast %326 : vector<8x1xf32> to vector<8x1xf32>
    %328 = vector.broadcast %327 : vector<8x1xf32> to vector<8x8xf32>
    %329 = vector.broadcast %cst_74 : f32 to vector<8x8xf32>
    %330 = arith.select %325, %328, %329 : vector<8x8xi1>, vector<8x8xf32>
    %331 = arith.addf %323, %330 : vector<8x8xf32>
    %c2_i32 = arith.constant 2 : i32
    %332 = vector.broadcast %c2_i32 : i32 to vector<8x8xi32>
    %333 = arith.cmpi eq, %314, %332 : vector<8x8xi32>
    %334 = vector.extract_strided_slice %313 {offsets = [0, 2], sizes = [8, 1], strides = [1, 1]} : vector<8x16xf32> to vector<8x1xf32>
    %cst_75 = arith.constant 0.000000e+00 : f32
    %335 = vector.shape_cast %334 : vector<8x1xf32> to vector<8x1xf32>
    %336 = vector.broadcast %335 : vector<8x1xf32> to vector<8x8xf32>
    %337 = vector.broadcast %cst_75 : f32 to vector<8x8xf32>
    %338 = arith.select %333, %336, %337 : vector<8x8xi1>, vector<8x8xf32>
    %339 = arith.addf %331, %338 : vector<8x8xf32>
    %c3_i32 = arith.constant 3 : i32
    %340 = vector.broadcast %c3_i32 : i32 to vector<8x8xi32>
    %341 = arith.cmpi eq, %314, %340 : vector<8x8xi32>
    %342 = vector.extract_strided_slice %313 {offsets = [0, 3], sizes = [8, 1], strides = [1, 1]} : vector<8x16xf32> to vector<8x1xf32>
    %cst_76 = arith.constant 0.000000e+00 : f32
    %343 = vector.shape_cast %342 : vector<8x1xf32> to vector<8x1xf32>
    %344 = vector.broadcast %343 : vector<8x1xf32> to vector<8x8xf32>
    %345 = vector.broadcast %cst_76 : f32 to vector<8x8xf32>
    %346 = arith.select %341, %344, %345 : vector<8x8xi1>, vector<8x8xf32>
    %347 = arith.addf %339, %346 : vector<8x8xf32>
    %c4_i32 = arith.constant 4 : i32
    %348 = vector.broadcast %c4_i32 : i32 to vector<8x8xi32>
    %349 = arith.cmpi eq, %314, %348 : vector<8x8xi32>
    %350 = vector.extract_strided_slice %313 {offsets = [0, 4], sizes = [8, 1], strides = [1, 1]} : vector<8x16xf32> to vector<8x1xf32>
    %cst_77 = arith.constant 0.000000e+00 : f32
    %351 = vector.shape_cast %350 : vector<8x1xf32> to vector<8x1xf32>
    %352 = vector.broadcast %351 : vector<8x1xf32> to vector<8x8xf32>
    %353 = vector.broadcast %cst_77 : f32 to vector<8x8xf32>
    %354 = arith.select %349, %352, %353 : vector<8x8xi1>, vector<8x8xf32>
    %355 = arith.addf %347, %354 : vector<8x8xf32>
    %c5_i32 = arith.constant 5 : i32
    %356 = vector.broadcast %c5_i32 : i32 to vector<8x8xi32>
    %357 = arith.cmpi eq, %314, %356 : vector<8x8xi32>
    %358 = vector.extract_strided_slice %313 {offsets = [0, 5], sizes = [8, 1], strides = [1, 1]} : vector<8x16xf32> to vector<8x1xf32>
    %cst_78 = arith.constant 0.000000e+00 : f32
    %359 = vector.shape_cast %358 : vector<8x1xf32> to vector<8x1xf32>
    %360 = vector.broadcast %359 : vector<8x1xf32> to vector<8x8xf32>
    %361 = vector.broadcast %cst_78 : f32 to vector<8x8xf32>
    %362 = arith.select %357, %360, %361 : vector<8x8xi1>, vector<8x8xf32>
    %363 = arith.addf %355, %362 : vector<8x8xf32>
    %c6_i32 = arith.constant 6 : i32
    %364 = vector.broadcast %c6_i32 : i32 to vector<8x8xi32>
    %365 = arith.cmpi eq, %314, %364 : vector<8x8xi32>
    %366 = vector.extract_strided_slice %313 {offsets = [0, 6], sizes = [8, 1], strides = [1, 1]} : vector<8x16xf32> to vector<8x1xf32>
    %cst_79 = arith.constant 0.000000e+00 : f32
    %367 = vector.shape_cast %366 : vector<8x1xf32> to vector<8x1xf32>
    %368 = vector.broadcast %367 : vector<8x1xf32> to vector<8x8xf32>
    %369 = vector.broadcast %cst_79 : f32 to vector<8x8xf32>
    %370 = arith.select %365, %368, %369 : vector<8x8xi1>, vector<8x8xf32>
    %371 = arith.addf %363, %370 : vector<8x8xf32>
    %c7_i32 = arith.constant 7 : i32
    %372 = vector.broadcast %c7_i32 : i32 to vector<8x8xi32>
    %373 = arith.cmpi eq, %314, %372 : vector<8x8xi32>
    %374 = vector.extract_strided_slice %313 {offsets = [0, 7], sizes = [8, 1], strides = [1, 1]} : vector<8x16xf32> to vector<8x1xf32>
    %cst_80 = arith.constant 0.000000e+00 : f32
    %375 = vector.shape_cast %374 : vector<8x1xf32> to vector<8x1xf32>
    %376 = vector.broadcast %375 : vector<8x1xf32> to vector<8x8xf32>
    %377 = vector.broadcast %cst_80 : f32 to vector<8x8xf32>
    %378 = arith.select %373, %376, %377 : vector<8x8xi1>, vector<8x8xf32>
    %379 = arith.addf %371, %378 : vector<8x8xf32>
    %c8_i32 = arith.constant 8 : i32
    %380 = vector.broadcast %c8_i32 : i32 to vector<8x8xi32>
    %381 = arith.cmpi eq, %314, %380 : vector<8x8xi32>
    %382 = vector.extract_strided_slice %313 {offsets = [0, 8], sizes = [8, 1], strides = [1, 1]} : vector<8x16xf32> to vector<8x1xf32>
    %cst_81 = arith.constant 0.000000e+00 : f32
    %383 = vector.shape_cast %382 : vector<8x1xf32> to vector<8x1xf32>
    %384 = vector.broadcast %383 : vector<8x1xf32> to vector<8x8xf32>
    %385 = vector.broadcast %cst_81 : f32 to vector<8x8xf32>
    %386 = arith.select %381, %384, %385 : vector<8x8xi1>, vector<8x8xf32>
    %387 = arith.addf %379, %386 : vector<8x8xf32>
    %c9_i32 = arith.constant 9 : i32
    %388 = vector.broadcast %c9_i32 : i32 to vector<8x8xi32>
    %389 = arith.cmpi eq, %314, %388 : vector<8x8xi32>
    %390 = vector.extract_strided_slice %313 {offsets = [0, 9], sizes = [8, 1], strides = [1, 1]} : vector<8x16xf32> to vector<8x1xf32>
    %cst_82 = arith.constant 0.000000e+00 : f32
    %391 = vector.shape_cast %390 : vector<8x1xf32> to vector<8x1xf32>
    %392 = vector.broadcast %391 : vector<8x1xf32> to vector<8x8xf32>
    %393 = vector.broadcast %cst_82 : f32 to vector<8x8xf32>
    %394 = arith.select %389, %392, %393 : vector<8x8xi1>, vector<8x8xf32>
    %395 = arith.addf %387, %394 : vector<8x8xf32>
    %c10_i32 = arith.constant 10 : i32
    %396 = vector.broadcast %c10_i32 : i32 to vector<8x8xi32>
    %397 = arith.cmpi eq, %314, %396 : vector<8x8xi32>
    %398 = vector.extract_strided_slice %313 {offsets = [0, 10], sizes = [8, 1], strides = [1, 1]} : vector<8x16xf32> to vector<8x1xf32>
    %cst_83 = arith.constant 0.000000e+00 : f32
    %399 = vector.shape_cast %398 : vector<8x1xf32> to vector<8x1xf32>
    %400 = vector.broadcast %399 : vector<8x1xf32> to vector<8x8xf32>
    %401 = vector.broadcast %cst_83 : f32 to vector<8x8xf32>
    %402 = arith.select %397, %400, %401 : vector<8x8xi1>, vector<8x8xf32>
    %403 = arith.addf %395, %402 : vector<8x8xf32>
    %c11_i32 = arith.constant 11 : i32
    %404 = vector.broadcast %c11_i32 : i32 to vector<8x8xi32>
    %405 = arith.cmpi eq, %314, %404 : vector<8x8xi32>
    %406 = vector.extract_strided_slice %313 {offsets = [0, 11], sizes = [8, 1], strides = [1, 1]} : vector<8x16xf32> to vector<8x1xf32>
    %cst_84 = arith.constant 0.000000e+00 : f32
    %407 = vector.shape_cast %406 : vector<8x1xf32> to vector<8x1xf32>
    %408 = vector.broadcast %407 : vector<8x1xf32> to vector<8x8xf32>
    %409 = vector.broadcast %cst_84 : f32 to vector<8x8xf32>
    %410 = arith.select %405, %408, %409 : vector<8x8xi1>, vector<8x8xf32>
    %411 = arith.addf %403, %410 : vector<8x8xf32>
    %c12_i32 = arith.constant 12 : i32
    %412 = vector.broadcast %c12_i32 : i32 to vector<8x8xi32>
    %413 = arith.cmpi eq, %314, %412 : vector<8x8xi32>
    %414 = vector.extract_strided_slice %313 {offsets = [0, 12], sizes = [8, 1], strides = [1, 1]} : vector<8x16xf32> to vector<8x1xf32>
    %cst_85 = arith.constant 0.000000e+00 : f32
    %415 = vector.shape_cast %414 : vector<8x1xf32> to vector<8x1xf32>
    %416 = vector.broadcast %415 : vector<8x1xf32> to vector<8x8xf32>
    %417 = vector.broadcast %cst_85 : f32 to vector<8x8xf32>
    %418 = arith.select %413, %416, %417 : vector<8x8xi1>, vector<8x8xf32>
    %419 = arith.addf %411, %418 : vector<8x8xf32>
    %c13_i32 = arith.constant 13 : i32
    %420 = vector.broadcast %c13_i32 : i32 to vector<8x8xi32>
    %421 = arith.cmpi eq, %314, %420 : vector<8x8xi32>
    %422 = vector.extract_strided_slice %313 {offsets = [0, 13], sizes = [8, 1], strides = [1, 1]} : vector<8x16xf32> to vector<8x1xf32>
    %cst_86 = arith.constant 0.000000e+00 : f32
    %423 = vector.shape_cast %422 : vector<8x1xf32> to vector<8x1xf32>
    %424 = vector.broadcast %423 : vector<8x1xf32> to vector<8x8xf32>
    %425 = vector.broadcast %cst_86 : f32 to vector<8x8xf32>
    %426 = arith.select %421, %424, %425 : vector<8x8xi1>, vector<8x8xf32>
    %427 = arith.addf %419, %426 : vector<8x8xf32>
    %c14_i32 = arith.constant 14 : i32
    %428 = vector.broadcast %c14_i32 : i32 to vector<8x8xi32>
    %429 = arith.cmpi eq, %314, %428 : vector<8x8xi32>
    %430 = vector.extract_strided_slice %313 {offsets = [0, 14], sizes = [8, 1], strides = [1, 1]} : vector<8x16xf32> to vector<8x1xf32>
    %cst_87 = arith.constant 0.000000e+00 : f32
    %431 = vector.shape_cast %430 : vector<8x1xf32> to vector<8x1xf32>
    %432 = vector.broadcast %431 : vector<8x1xf32> to vector<8x8xf32>
    %433 = vector.broadcast %cst_87 : f32 to vector<8x8xf32>
    %434 = arith.select %429, %432, %433 : vector<8x8xi1>, vector<8x8xf32>
    %435 = arith.addf %427, %434 : vector<8x8xf32>
    %c15_i32 = arith.constant 15 : i32
    %436 = vector.broadcast %c15_i32 : i32 to vector<8x8xi32>
    %437 = arith.cmpi eq, %314, %436 : vector<8x8xi32>
    %438 = vector.extract_strided_slice %313 {offsets = [0, 15], sizes = [8, 1], strides = [1, 1]} : vector<8x16xf32> to vector<8x1xf32>
    %cst_88 = arith.constant 0.000000e+00 : f32
    %439 = vector.shape_cast %438 : vector<8x1xf32> to vector<8x1xf32>
    %440 = vector.broadcast %439 : vector<8x1xf32> to vector<8x8xf32>
    %441 = vector.broadcast %cst_88 : f32 to vector<8x8xf32>
    %442 = arith.select %437, %440, %441 : vector<8x8xi1>, vector<8x8xf32>
    %443 = arith.addf %435, %442 : vector<8x8xf32>
    %444 = vector.extract_strided_slice %0 {offsets = [0, 10], sizes = [8, 8], strides = [1, 1]} : vector<8x18xi32> to vector<8x8xi32>
    %c0_i32_89 = arith.constant 0 : i32
    %445 = vector.broadcast %c0_i32_89 : i32 to vector<8x8xi32>
    %446 = arith.cmpi sgt, %444, %445 : vector<8x8xi32>
    %cst_90 = arith.constant -9.999900e+04 : f32
    %447 = vector.broadcast %cst_90 : f32 to vector<8x8xf32>
    %448 = arith.select %446, %443, %447 : vector<8x8xi1>, vector<8x8xf32>
    %cst_91 = arith.constant dense<0xFF800000> : vector<8xf32>
    %449 = vector.multi_reduction <maximumf>, %448, %cst_91 [1] : vector<8x8xf32> to vector<8xf32>
    %450 = vector.shape_cast %449 : vector<8xf32> to vector<8x1xf32>
    %451 = vector.broadcast %450 : vector<8x1xf32> to vector<8x8xf32>
    %452 = arith.subf %448, %451 : vector<8x8xf32>
    %453 = math.exp %452 : vector<8x8xf32>
    %cst_92 = arith.constant dense<0.000000e+00> : vector<8xf32>
    %454 = vector.multi_reduction <add>, %453, %cst_92 [1] : vector<8x8xf32> to vector<8xf32>
    %455 = vector.shape_cast %454 : vector<8xf32> to vector<8x1xf32>
    %456 = math.log %455 : vector<8x1xf32>
    %457 = vector.broadcast %456 : vector<8x1xf32> to vector<8x8xf32>
    %458 = arith.subf %452, %457 : vector<8x8xf32>
    %cst_93 = arith.constant 0.000000e+00 : f32
    %459 = vector.broadcast %cst_93 : f32 to vector<8x24xf32>
    %460 = tpu.concatenate %458, %104, %196, %288, %102, %194, %286, %12, %459 in 1 : vector<8x8xf32>, vector<8x32xf32>, vector<8x32xf32>, vector<8x32xf32>, vector<8x32xf32>, vector<8x32xf32>, vector<8x32xf32>, vector<8x32xf32>, vector<8x24xf32> -> vector<8x256xf32>
    %c0_94 = arith.constant 0 : index
    %c0_95 = arith.constant 0 : index
    %461 = vector.load %arg4[%c0_94, %c0_95] : memref<8x256xf32, #tpu.memory_space<vmem>>, vector<8x256xf32>
    tpu.vector_store %arg4[%c0_94, %c0_95], %460 {strides = array<i32>} : memref<8x256xf32, #tpu.memory_space<vmem>>, vector<8x256xf32>,
    return
  }
}

</mosaic_0001>

<llo_original>
// kernel: policy_forward.1
$region0: #{policy_forward.1}
  #allocation0 [shape = 'u32[]', space=smem, size = 0x4, offset = 0x4, fixed_abs, tag = 'smem constant byte address 0x4 - core index']
  #allocation1 [shape = 'u32[72,128]{1,0:T(1,128)}', space=vmem, size = 0x9000, scoped, tag = 'internal scratch']
  %s0 = inlined_call_operand.vmem [shape: s32[8,18], index: 0, kind: input, shape index: {}]
  %s1 = inlined_call_operand.vmem [shape: f32[16,32], index: 1, kind: input, shape index: {}]
  %s2 = inlined_call_operand.vmem [shape: f32[26,128], index: 2, kind: input, shape index: {}]
  %s3 = inlined_call_operand.hbm [shape: bf16[224,128], index: 3, kind: input, shape index: {}]
  %s4 = inlined_call_operand.vmem [shape: f32[8,256], index: 4, kind: output, shape index: {}]
  %s5 = sld [smem:[#allocation0]]
  $region30: #{policy_forward.1} parent=0
    _
  %s7 = ssub.s32 1, %s5
  %s8 = scalar_select 0, %s7, %s5
  $region1: #{policy_forward.1} parent=0
    #allocation2 [shape = 'u8[57344]{0}', space=vmem, size = 0xe000, scoped, tag = 'input window, operand 3, single buffered']
    #allocation3 [shape = 's32[1]{0}', space=sflag, size = 0x4, scoped, tag = 'scoped memory for policy_forward.1']
    %9 = vsyncpa [#allocation3], 0
    // Predicated region
    $region2: #{policy_forward.1} parent=1 // pred_check
      _
    $region3: #{policy_forward.1} parent=1 // pred_check_branch
      %11 = sbr.rel (0) target = $region5
    $region4: #{policy_forward.1} parent=1 // pred_region
      _
    $region5: #{policy_forward.1} parent=1 // pred_fallthru
      _
    // Predicated region
    $region6: #{policy_forward.1} parent=1 // pred_check
      _
    $region7: #{policy_forward.1} parent=1 // pred_check_branch
      %13 = sbr.rel (0) target = $region9
    $region8: #{policy_forward.1} parent=1 // pred_region
      _
    $region9: #{policy_forward.1} parent=1 // pred_fallthru
      _
    // Predicated region
    $region10: #{policy_forward.1} parent=1 // pred_check
      _
    $region11: #{policy_forward.1} parent=1 // pred_check_branch
      %15 = sbr.rel (0) target = $region13
    $region12: #{policy_forward.1} parent=1 // pred_region
      _
    $region13: #{policy_forward.1} parent=1 // pred_fallthru
      _
    // Predicated region
    $region14: #{policy_forward.1} parent=1 // pred_check
      _
    $region15: #{policy_forward.1} parent=1 // pred_check_branch
      %17 = sbr.rel (0) target = $region17
    $region16: #{policy_forward.1} parent=1 // pred_region
      %19 = vsyncadd [#allocation3], 0
      %s20 = sshll.u32 %s3, 4
      %s21 = int_to_ptr.hbm [resolvable:$true] %s20
      %s22 = sshll.u32 [#allocation2], 4
      %s23 = int_to_ptr.vmem [resolvable:$true] %s22
      %28 = dma.hbm_to_vmem [thread:$0]  %s21, 1792, %s23, [#allocation3], 64, 64, 4
    $region17: #{policy_forward.1} parent=1 // pred_fallthru
      _
    // Predicated region
    $region18: #{policy_forward.1} parent=1 // pred_check
      _
    $region19: #{policy_forward.1} parent=1 // pred_check_branch
      %30 = sbr.rel (0) target = $region21
    $region20: #{policy_forward.1} parent=1 // pred_region
      %32 = dma.done [#allocation3], 1792
    $region21: #{policy_forward.1} parent=1 // pred_fallthru
      _
    %v34 = vld [vmem:[%s0] sm:$0xff]
    %v35 = vld [vmem:[%s1] sm:$0xff]
    %v36 = vld [vmem:[%s1 + $0x8] sm:$0xff]
    %37 = vrot.lane.b32.xlu0 %v34, 127
    %v38 = vpop.permute.xlu0 %37
    %v39 = vlaneseq
    %v40 = vand.u32 %v39, 127
    %41 = vset.pattern.permute.xlu0 0
    %42 = vperm.xlu0 %41, %v34
    %v43 = vpop.permute.xlu0 %42
    %44 = vset.pattern.permute.xlu0 0
    %45 = vperm.xlu0 %44, %v38
    %v46 = vpop.permute.xlu0 %45
    %vm47 = vcmp.eq.s32.totalorder %v43, %v40
    %vm48 = vcmp.eq.s32.totalorder %v46, %v40
    %v49 = vsel %vm47, 1, 0
    %v50 = vsel %vm48, 1, 0
    %v51 = vcvt.s32.f32 %v49
    %v52 = vcvt.s32.f32 %v50
    %vm53 = vcmask 130048
    %v55 = vsel %vm53, %v51, 0
    %v58 = vsel %vm53, %v52, 0
    %60 = vmatpush.msra.mxu0 0.0
    %61 = vmatpush.msra.mxu0 0.0
    %62 = vmatpush.msra.mxu0 0.0
    %63 = vmatpush.msra.mxu0 0.0
    %64 = vmatpush.msra.mxu0 0.0
    %65 = vmatpush.msra.mxu0 0.0
    %66 = vmatpush.msra.mxu0 0.0
    %67 = vmatpush.msra.mxu0 0.0
    %68 = vmatpush.msra.mxu0 0.0
    %69 = vmatpush.msra.mxu0 0.0
    %70 = vmatpush.msra.mxu0 0.0
    %71 = vmatpush.msra.mxu0 0.0
    %72 = vmatpush.msra.mxu0 0.0
    %73 = vmatpush.msra.mxu0 0.0
    %74 = vmatpush.msra.mxu0 %v36
    %75 = vmatpush.msra.mxu0 %v35
    %76 = vmatmul.f32.gmra.mxu0 %v55
    %v77 = vpop.f32.mrf.mxu0
    %v78 = vadd.f32 0.0, %v77
    %79 = vmatmul.f32.gmra.mxu0 %v58
    %v80 = vpop.f32.mrf.mxu0
    %v81 = vadd.f32 0.0, %v80
    %82 = vdwg.mxu0
    %v83 = vld [vmem:[%s2] sm:$0xff]
    %v84 = vld [vmem:[#allocation2] sm:$0xf]
    %v85 = vld [vmem:[#allocation2 + $0x4] sm:$0xf]
    %v86 = vld [vmem:[#allocation2 + $0x8] sm:$0xf]
    %v87 = vld [vmem:[#allocation2 + $0xc] sm:$0xf]
    %v88 = vpack.c.bf16 %v78, %v78
    %v89 = vperm.slane %v83, 0
    %v94 = vunpack.c.l.b16 %v84
    %v95 = vunpack.c.l.b16 %v85
    %v96 = vunpack.c.l.b16 %v86
    %v97 = vunpack.c.l.b16 %v87
    %v98 = vpack.c.b16 %v95, %v94
    %v99 = vpack.c.b16 %v97, %v96
    %vm102 = vcmask 261120
    %v104 = vsel %vm102, %v88, 0
    %106 = vmatpush.bf16.msra.mxu0 0
    %107 = vmatpush.bf16.msra.mxu0 0
    %108 = vmatpush.bf16.msra.mxu0 0
    %109 = vmatpush.bf16.msra.mxu0 0
    %110 = vmatpush.bf16.msra.mxu0 0
    %111 = vmatpush.bf16.msra.mxu0 0
    %112 = vmatpush.bf16.msra.mxu0 %v99
    %113 = vmatpush.bf16.msra.mxu0 %v98
    %114 = vmatmul.bf16.gmra.mxu0 %v104
    %v115 = vpop.f32.mrf.mxu0
    %v116 = vadd.f32 %v89, %v115
    %v117 = vpop.f32.mrf.mxu0
    %118 = vdwg.mxu0
    %119 = vadd.xlane.f32.xlu0 %v116
    %v120 = vpop.xlane.xlu0 %119
    %v121 = vrcp.pop 128.0
    %v122 = vmul.f32 128.0, %v121
    %v123 = vsub.f32 1.0, %v122
    %v124 = vmul.f32 %v121, %v123
    %v125 = vadd.f32 %v121, %v124
    %vm126 = vweird.f32 %v121
    %v127 = vsel %vm126, %v121, %v125
    %v128 = vmul.f32 %v120, %v127
    %v129 = vsub.f32 %v116, %v128
    %v130 = vmul.f32 %v129, %v129
    %131 = vadd.xlane.f32.xlu0 %v130
    %v132 = vpop.xlane.xlu0 %131
    %v133 = vmul.f32 %v132, %v127
    %v134 = vadd.f32 %v133, 1e-05
    %v135 = vrsqrt.pop %v134
    %v136 = vmul.f32 %v135, %v134
    %v137 = vmul.f32 %v136, %v135
    %v138 = vmul.f32 0.5, %v137
    %v139 = vsub.f32 1.5, %v138
    %v140 = vmul.f32 %v135, %v139
    %vm141 = vweird.f32 %v134
    %vm142 = vweird.f32 %v135
    %vm143 = vmor %vm141, %vm142
    %v144 = vsel %vm143, %v135, %v140
    %v145 = vmul.f32 %v129, %v144
    %v146 = vperm.slane %v83, 2
    %v147 = vmul.f32 %v145, %v146
    %v148 = vperm.slane %v83, 3
    %v149 = vadd.f32 %v147, %v148
    %vm150 = vcmask 1041409
    %v151 = vsel %vm150, %v83, 0.0
    %152 = vadd.xlane.f32.xlu0 %v151
    %v153 = vpop.xlane.xlu0 %152
    %v154 = vmul.f32 %v153, %v127
    %v155 = vsub.f32 %v83, %v154
    %v156 = vmul.f32 %v155, %v155
    %v157 = vsel %vm150, %v156, 0.0
    %158 = vadd.xlane.f32.xlu0 %v157
    %v159 = vpop.xlane.xlu0 %158
    %v160 = vmul.f32 %v159, %v127
    %v161 = vadd.f32 %v160, 1e-05
    %v162 = vrsqrt.pop %v161
    %v163 = vmul.f32 %v162, %v161
    %v164 = vmul.f32 %v163, %v162
    %v165 = vmul.f32 0.5, %v164
    %v166 = vsub.f32 1.5, %v165
    %v167 = vmul.f32 %v162, %v166
    %vm168 = vweird.f32 %v161
    %vm169 = vweird.f32 %v162
    %vm170 = vmor %vm168, %vm169
    %v171 = vsel %vm170, %v162, %v167
    %v172 = vmul.f32 %v155, %v171
    %v174 = vrot.slane %v83, 3
    %v176 = vmul.f32 %v172, %v174
    %v177 = vrot.slane %v83, 4
    %v179 = vadd.f32 %v176, %v177
    %v180 = vperm.slane %v179, 1
    %v181 = vadd.f32 %v149, %v180
    %v182 = vxor.u32 %v181, 2147483648
    %v183 = vmul.f32 %v182, 1.442695
    %v184 = vpow.pop %v183
    %v185 = vadd.f32 %v184, 1.0
    %v186 = vrcp.pop %v185
    %v187 = vmul.f32 %v185, %v186
    %v188 = vsub.f32 1.0, %v187
    %v189 = vmul.f32 %v186, %v188
    %v190 = vadd.f32 %v186, %v189
    %vm191 = vweird.f32 %v185
    %vm192 = vweird.f32 %v186
    %vm193 = vmor %vm191, %vm192
    %v194 = vsel %vm193, %v186, %v190
    %v195 = vand.u32 2147483647, %v185
    %vm196 = vcmp.eq.f32.partialorder %v195, 8.507059e+37
    %v197 = vand.u32 %v185, 2147483648
    %v198 = vor.u32 1.1754944e-38, %v197
    %v199 = vsel %vm196, %v198, %v194
    %v200 = vmul.f32 1.0, %v199
    %v201 = vtanh.pop %v181
    %203 = vrot.lane.b32.xlu0 %v201, 32
    %v204 = vpop.permute.xlu0 %203
    %v206 = vmul.f32 %v200, %v204
    %v207 = vsel %vm102, %v206, 0.0
    %208 = vadd.xlane.f32.xlu0 %v207
    %v209 = vpop.xlane.xlu0 %208
    %v210 = vrcp.pop 32.0
    %v211 = vmul.f32 32.0, %v210
    %v212 = vsub.f32 1.0, %v211
    %v213 = vmul.f32 %v210, %v212
    %v214 = vadd.f32 %v210, %v213
    %vm215 = vweird.f32 %v210
    %v216 = vsel %vm215, %v210, %v214
    %v217 = vmul.f32 %v209, %v216
    %v218 = vsub.f32 %v206, %v217
    %v219 = vmul.f32 %v218, %v218
    %v220 = vsel %vm102, %v219, 0.0
    %221 = vadd.xlane.f32.xlu0 %v220
    %v222 = vpop.xlane.xlu0 %221
    %v223 = vmul.f32 %v222, %v216
    %v224 = vadd.f32 %v223, 1e-05
    %v225 = vrsqrt.pop %v224
    %v226 = vmul.f32 %v225, %v224
    %v227 = vmul.f32 %v226, %v225
    %v228 = vmul.f32 0.5, %v227
    %v229 = vsub.f32 1.5, %v228
    %v230 = vmul.f32 %v225, %v229
    %vm231 = vweird.f32 %v224
    %vm232 = vweird.f32 %v225
    %vm233 = vmor %vm231, %vm232
    %v234 = vsel %vm233, %v225, %v230
    %v235 = vmul.f32 %v218, %v234
    %v236 = vperm.slane %v83, 6
    %v237 = vmul.f32 %v235, %v236
    %v238 = vperm.slane %v83, 7
    %v239 = vadd.f32 %v237, %v238
    %v240 = vtanh.pop %v239
    %242 = vrot.lane.b32.xlu0 %v240, 64
    %v243 = vpop.permute.xlu0 %242
    %v245 = vmul.f32 %v200, %v243
    %v246 = vld [vmem:[%s2 + $0x8] sm:$0xff]
    %v247 = vld [vmem:[#allocation2 + $0x10] sm:$0xf]
    %v248 = vld [vmem:[#allocation2 + $0x14] sm:$0xf]
    %v249 = vld [vmem:[#allocation2 + $0x18] sm:$0xf]
    %v250 = vld [vmem:[#allocation2 + $0x1c] sm:$0xf]
    %v251 = vpack.c.bf16 %v245, %v245
    %v252 = vperm.slane %v246, 0
    %254 = vrot.lane.b32.xlu0 %v251, 64
    %v255 = vpop.permute.xlu0 %254
    %v260 = vunpack.c.l.b16 %v247
    %v261 = vunpack.c.l.b16 %v248
    %v262 = vunpack.c.l.b16 %v249
    %v263 = vunpack.c.l.b16 %v250
    %v264 = vpack.c.b16 %v261, %v260
    %v265 = vpack.c.b16 %v263, %v262
    %v269 = vsel %vm102, %v255, 0
    %271 = vmatpush.bf16.msra.mxu0 0
    %272 = vmatpush.bf16.msra.mxu0 0
    %273 = vmatpush.bf16.msra.mxu0 0
    %274 = vmatpush.bf16.msra.mxu0 0
    %275 = vmatpush.bf16.msra.mxu0 0
    %276 = vmatpush.bf16.msra.mxu0 0
    %277 = vmatpush.bf16.msra.mxu0 %v265
    %278 = vmatpush.bf16.msra.mxu0 %v264
    %279 = vmatmul.bf16.gmra.mxu0 %v269
    %v280 = vpop.f32.mrf.mxu0
    %v281 = vadd.f32 %v252, %v280
    %v282 = vpop.f32.mrf.mxu0
    %283 = vdwg.mxu0
    %284 = vadd.xlane.f32.xlu0 %v281
    %v285 = vpop.xlane.xlu0 %284
    %v286 = vmul.f32 %v285, %v127
    %v287 = vsub.f32 %v281, %v286
    %v288 = vmul.f32 %v287, %v287
    %289 = vadd.xlane.f32.xlu0 %v288
    %v290 = vpop.xlane.xlu0 %289
    %v291 = vmul.f32 %v290, %v127
    %v292 = vadd.f32 %v291, 1e-05
    %v293 = vrsqrt.pop %v292
    %v294 = vmul.f32 %v293, %v292
    %v295 = vmul.f32 %v294, %v293
    %v296 = vmul.f32 0.5, %v295
    %v297 = vsub.f32 1.5, %v296
    %v298 = vmul.f32 %v293, %v297
    %vm299 = vweird.f32 %v292
    %vm300 = vweird.f32 %v293
    %vm301 = vmor %vm299, %vm300
    %v302 = vsel %vm301, %v293, %v298
    %v303 = vmul.f32 %v287, %v302
    %v304 = vperm.slane %v246, 2
    %v305 = vmul.f32 %v303, %v304
    %v306 = vperm.slane %v246, 3
    %v307 = vadd.f32 %v305, %v306
    %v308 = vsel %vm150, %v246, 0.0
    %309 = vadd.xlane.f32.xlu0 %v308
    %v310 = vpop.xlane.xlu0 %309
    %v311 = vmul.f32 %v310, %v127
    %v312 = vsub.f32 %v246, %v311
    %v313 = vmul.f32 %v312, %v312
    %v314 = vsel %vm150, %v313, 0.0
    %315 = vadd.xlane.f32.xlu0 %v314
    %v316 = vpop.xlane.xlu0 %315
    %v317 = vmul.f32 %v316, %v127
    %v318 = vadd.f32 %v317, 1e-05
    %v319 = vrsqrt.pop %v318
    %v320 = vmul.f32 %v319, %v318
    %v321 = vmul.f32 %v320, %v319
    %v322 = vmul.f32 0.5, %v321
    %v323 = vsub.f32 1.5, %v322
    %v324 = vmul.f32 %v319, %v323
    %vm325 = vweird.f32 %v318
    %vm326 = vweird.f32 %v319
    %vm327 = vmor %vm325, %vm326
    %v328 = vsel %vm327, %v319, %v324
    %v329 = vmul.f32 %v312, %v328
    %v331 = vrot.slane %v246, 3
    %v333 = vmul.f32 %v329, %v331
    %v334 = vrot.slane %v246, 4
    %v336 = vadd.f32 %v333, %v334
    %v337 = vperm.slane %v336, 1
    %v338 = vadd.f32 %v307, %v337
    %v339 = vxor.u32 %v338, 2147483648
    %v340 = vmul.f32 %v339, 1.442695
    %v341 = vpow.pop %v340
    %v342 = vadd.f32 %v341, 1.0
    %v343 = vrcp.pop %v342
    %v344 = vmul.f32 %v342, %v343
    %v345 = vsub.f32 1.0, %v344
    %v346 = vmul.f32 %v343, %v345
    %v347 = vadd.f32 %v343, %v346
    %vm348 = vweird.f32 %v342
    %vm349 = vweird.f32 %v343
    %vm350 = vmor %vm348, %vm349
    %v351 = vsel %vm350, %v343, %v347
    %v352 = vand.u32 2147483647, %v342
    %vm353 = vcmp.eq.f32.partialorder %v352, 8.507059e+37
    %v354 = vand.u32 %v342, 2147483648
    %v355 = vor.u32 1.1754944e-38, %v354
    %v356 = vsel %vm353, %v355, %v351
    %v357 = vmul.f32 1.0, %v356
    %v358 = vtanh.pop %v338
    %360 = vrot.lane.b32.xlu0 %v358, 32
    %v361 = vpop.permute.xlu0 %360
    %v363 = vmul.f32 %v357, %v361
    %v364 = vsel %vm102, %v363, 0.0
    %365 = vadd.xlane.f32.xlu0 %v364
    %v366 = vpop.xlane.xlu0 %365
    %v367 = vmul.f32 %v366, %v216
    %v368 = vsub.f32 %v363, %v367
    %v369 = vmul.f32 %v368, %v368
    %v370 = vsel %vm102, %v369, 0.0
    %371 = vadd.xlane.f32.xlu0 %v370
    %v372 = vpop.xlane.xlu0 %371
    %v373 = vmul.f32 %v372, %v216
    %v374 = vadd.f32 %v373, 1e-05
    %v375 = vrsqrt.pop %v374
    %v376 = vmul.f32 %v375, %v374
    %v377 = vmul.f32 %v376, %v375
    %v378 = vmul.f32 0.5, %v377
    %v379 = vsub.f32 1.5, %v378
    %v380 = vmul.f32 %v375, %v379
    %vm381 = vweird.f32 %v374
    %vm382 = vweird.f32 %v375
    %vm383 = vmor %vm381, %vm382
    %v384 = vsel %vm383, %v375, %v380
    %v385 = vmul.f32 %v368, %v384
    %v386 = vperm.slane %v246, 6
    %v387 = vmul.f32 %v385, %v386
    %v388 = vperm.slane %v246, 7
    %v389 = vadd.f32 %v387, %v388
    %v390 = vtanh.pop %v389
    %392 = vrot.lane.b32.xlu0 %v390, 64
    %v393 = vpop.permute.xlu0 %392
    %v395 = vmul.f32 %v357, %v393
    %v396 = vld [vmem:[%s2 + $0x10] sm:$0xff]
    %v397 = vld [vmem:[#allocation2 + $0x20] sm:$0xf]
    %v398 = vld [vmem:[#allocation2 + $0x24] sm:$0xf]
    %v399 = vld [vmem:[#allocation2 + $0x28] sm:$0xf]
    %v400 = vld [vmem:[#allocation2 + $0x2c] sm:$0xf]
    %v401 = vpack.c.bf16 %v395, %v395
    %v402 = vperm.slane %v396, 0
    %404 = vrot.lane.b32.xlu0 %v401, 64
    %v405 = vpop.permute.xlu0 %404
    %v410 = vunpack.c.l.b16 %v397
    %v411 = vunpack.c.l.b16 %v398
    %v412 = vunpack.c.l.b16 %v399
    %v413 = vunpack.c.l.b16 %v400
    %v414 = vpack.c.b16 %v411, %v410
    %v415 = vpack.c.b16 %v413, %v412
    %v419 = vsel %vm102, %v405, 0
    %421 = vmatpush.bf16.msra.mxu0 0
    %422 = vmatpush.bf16.msra.mxu0 0
    %423 = vmatpush.bf16.msra.mxu0 0
    %424 = vmatpush.bf16.msra.mxu0 0
    %425 = vmatpush.bf16.msra.mxu0 0
    %426 = vmatpush.bf16.msra.mxu0 0
    %427 = vmatpush.bf16.msra.mxu0 %v415
    %428 = vmatpush.bf16.msra.mxu0 %v414
    %429 = vmatmul.bf16.gmra.mxu0 %v419
    %v430 = vpop.f32.mrf.mxu0
    %v431 = vadd.f32 %v402, %v430
    %v432 = vpop.f32.mrf.mxu0
    %433 = vdwg.mxu0
    %434 = vadd.xlane.f32.xlu0 %v431
    %v435 = vpop.xlane.xlu0 %434
    %v436 = vmul.f32 %v435, %v127
    %v437 = vsub.f32 %v431, %v436
    %v438 = vmul.f32 %v437, %v437
    %439 = vadd.xlane.f32.xlu0 %v438
    %v440 = vpop.xlane.xlu0 %439
    %v441 = vmul.f32 %v440, %v127
    %v442 = vadd.f32 %v441, 1e-05
    %v443 = vrsqrt.pop %v442
    %v444 = vmul.f32 %v443, %v442
    %v445 = vmul.f32 %v444, %v443
    %v446 = vmul.f32 0.5, %v445
    %v447 = vsub.f32 1.5, %v446
    %v448 = vmul.f32 %v443, %v447
    %vm449 = vweird.f32 %v442
    %vm450 = vweird.f32 %v443
    %vm451 = vmor %vm449, %vm450
    %v452 = vsel %vm451, %v443, %v448
    %v453 = vmul.f32 %v437, %v452
    %v454 = vperm.slane %v396, 2
    %v455 = vmul.f32 %v453, %v454
    %v456 = vperm.slane %v396, 3
    %v457 = vadd.f32 %v455, %v456
    %v458 = vsel %vm150, %v396, 0.0
    %459 = vadd.xlane.f32.xlu0 %v458
    %v460 = vpop.xlane.xlu0 %459
    %v461 = vmul.f32 %v460, %v127
    %v462 = vsub.f32 %v396, %v461
    %v463 = vmul.f32 %v462, %v462
    %v464 = vsel %vm150, %v463, 0.0
    %465 = vadd.xlane.f32.xlu0 %v464
    %v466 = vpop.xlane.xlu0 %465
    %v467 = vmul.f32 %v466, %v127
    %v468 = vadd.f32 %v467, 1e-05
    %v469 = vrsqrt.pop %v468
    %v470 = vmul.f32 %v469, %v468
    %v471 = vmul.f32 %v470, %v469
    %v472 = vmul.f32 0.5, %v471
    %v473 = vsub.f32 1.5, %v472
    %v474 = vmul.f32 %v469, %v473
    %vm475 = vweird.f32 %v468
    %vm476 = vweird.f32 %v469
    %vm477 = vmor %vm475, %vm476
    %v478 = vsel %vm477, %v469, %v474
    %v479 = vmul.f32 %v462, %v478
    %v481 = vrot.slane %v396, 3
    %v483 = vmul.f32 %v479, %v481
    %v484 = vrot.slane %v396, 4
    %v486 = vadd.f32 %v483, %v484
    %v487 = vperm.slane %v486, 1
    %v488 = vadd.f32 %v457, %v487
    %v489 = vxor.u32 %v488, 2147483648
    %v490 = vmul.f32 %v489, 1.442695
    %v491 = vpow.pop %v490
    %v492 = vadd.f32 %v491, 1.0
    %v493 = vrcp.pop %v492
    %v494 = vmul.f32 %v492, %v493
    %v495 = vsub.f32 1.0, %v494
    %v496 = vmul.f32 %v493, %v495
    %v497 = vadd.f32 %v493, %v496
    %vm498 = vweird.f32 %v492
    %vm499 = vweird.f32 %v493
    %vm500 = vmor %vm498, %vm499
    %v501 = vsel %vm500, %v493, %v497
    %v502 = vand.u32 2147483647, %v492
    %vm503 = vcmp.eq.f32.partialorder %v502, 8.507059e+37
    %v504 = vand.u32 %v492, 2147483648
    %v505 = vor.u32 1.1754944e-38, %v504
    %v506 = vsel %vm503, %v505, %v501
    %v507 = vmul.f32 1.0, %v506
    %v508 = vtanh.pop %v488
    %510 = vrot.lane.b32.xlu0 %v508, 32
    %v511 = vpop.permute.xlu0 %510
    %v513 = vmul.f32 %v507, %v511
    %v514 = vsel %vm102, %v513, 0.0
    %515 = vadd.xlane.f32.xlu0 %v514
    %v516 = vpop.xlane.xlu0 %515
    %v517 = vmul.f32 %v516, %v216
    %v518 = vsub.f32 %v513, %v517
    %v519 = vmul.f32 %v518, %v518
    %v520 = vsel %vm102, %v519, 0.0
    %521 = vadd.xlane.f32.xlu0 %v520
    %v522 = vpop.xlane.xlu0 %521
    %v523 = vmul.f32 %v522, %v216
    %v524 = vadd.f32 %v523, 1e-05
    %v525 = vrsqrt.pop %v524
    %v526 = vmul.f32 %v525, %v524
    %v527 = vmul.f32 %v526, %v525
    %v528 = vmul.f32 0.5, %v527
    %v529 = vsub.f32 1.5, %v528
    %v530 = vmul.f32 %v525, %v529
    %vm531 = vweird.f32 %v524
    %vm532 = vweird.f32 %v525
    %vm533 = vmor %vm531, %vm532
    %v534 = vsel %vm533, %v525, %v530
    %v535 = vmul.f32 %v518, %v534
    %v536 = vperm.slane %v396, 6
    %v537 = vmul.f32 %v535, %v536
    %v538 = vperm.slane %v396, 7
    %v539 = vadd.f32 %v537, %v538
    %v540 = vtanh.pop %v539
    %542 = vrot.lane.b32.xlu0 %v540, 64
    %v543 = vpop.permute.xlu0 %542
    %v545 = vmul.f32 %v507, %v543
    %547 = vrot.lane.b32.xlu0 %v545, 64
    %v548 = vpop.permute.xlu0 %547
    %551 = vrot.lane.b32.xlu0 %v81, 32
    %v552 = vpop.permute.xlu0 %551
    %v554 = vsel %vm102, %v548, %v552
    %v555 = vld [vmem:[%s2 + $0x18] sm:$0x3]
    %v556 = vld [vmem:[#allocation2 + $0x30] sm:$0xf]
    %v557 = vld [vmem:[#allocation2 + $0x34] sm:$0xf]
    %v558 = vld [vmem:[#allocation2 + $0x38] sm:$0xf]
    %v559 = vld [vmem:[#allocation2 + $0x3c] sm:$0xf]
    %v560 = vld [vmem:[#allocation2 + $0x40] sm:$0xf]
    %v561 = vld [vmem:[#allocation2 + $0x44] sm:$0xf]
    %v562 = vld [vmem:[#allocation2 + $0x48] sm:$0xf]
    %v563 = vld [vmem:[#allocation2 + $0x4c] sm:$0xf]
    %v564 = vld [vmem:[#allocation2 + $0x50] sm:$0xf]
    %v565 = vld [vmem:[#allocation2 + $0x54] sm:$0xf]
    %v566 = vld [vmem:[#allocation2 + $0x58] sm:$0xf]
    %v567 = vld [vmem:[#allocation2 + $0x5c] sm:$0xf]
    %v568 = vld [vmem:[#allocation2 + $0x60] sm:$0xf]
    %v569 = vld [vmem:[#allocation2 + $0x64] sm:$0xf]
    %v570 = vld [vmem:[#allocation2 + $0x68] sm:$0xf]
    %v571 = vld [vmem:[#allocation2 + $0x6c] sm:$0xf]
    %v572 = vpack.c.bf16 %v554, %v554
    %v573 = vperm.slane %v555, 0
    %v582 = vunpack.c.l.b16 %v556
    %v583 = vunpack.c.l.b16 %v557
    %v584 = vunpack.c.l.b16 %v558
    %v585 = vunpack.c.l.b16 %v559
    %v586 = vunpack.c.l.b16 %v560
    %v587 = vunpack.c.l.b16 %v561
    %v588 = vunpack.c.l.b16 %v562
    %v589 = vunpack.c.l.b16 %v563
    %v590 = vpack.c.b16 %v583, %v582
    %v591 = vpack.c.b16 %v585, %v584
    %v592 = vpack.c.b16 %v587, %v586
    %v593 = vpack.c.b16 %v589, %v588
    %vm598 = vcmask 523264
    %v600 = vsel %vm598, %v572, 0
    %602 = vmatpush.bf16.msra.mxu0 0
    %603 = vmatpush.bf16.msra.mxu0 0
    %604 = vmatpush.bf16.msra.mxu0 0
    %605 = vmatpush.bf16.msra.mxu0 0
    %606 = vmatpush.bf16.msra.mxu0 %v593
    %607 = vmatpush.bf16.msra.mxu0 %v592
    %608 = vmatpush.bf16.msra.mxu0 %v591
    %609 = vmatpush.bf16.msra.mxu0 %v590
    %610 = vmatmul.bf16.gmra.mxu0 %v600
    %v611 = vpop.f32.mrf.mxu0
    %v612 = vadd.f32 %v573, %v611
    %v613 = vpop.f32.mrf.mxu0
    %614 = vdwg.mxu0
    %vm615 = vcmp.ge.f32.partialorder %v612, 0.0
    %v616 = vmul.f32 %v612, 0.01
    %v617 = vsel %vm615, %v612, %v616
    %v618 = vpack.c.bf16 %v617, %v617
    %v619 = vperm.slane %v555, 1
    %v628 = vunpack.c.l.b16 %v564
    %v629 = vunpack.c.l.b16 %v565
    %v630 = vunpack.c.l.b16 %v566
    %v631 = vunpack.c.l.b16 %v567
    %v632 = vunpack.c.l.b16 %v568
    %v633 = vunpack.c.l.b16 %v569
    %v634 = vunpack.c.l.b16 %v570
    %v635 = vunpack.c.l.b16 %v571
    %v636 = vpack.c.b16 %v629, %v628
    %v637 = vpack.c.b16 %v631, %v630
    %v638 = vpack.c.b16 %v633, %v632
    %v639 = vpack.c.b16 %v635, %v634
    %v645 = vsel %vm598, %v618, 0
    %647 = vmatpush.bf16.msra.mxu0 0
    %648 = vmatpush.bf16.msra.mxu0 0
    %649 = vmatpush.bf16.msra.mxu0 0
    %650 = vmatpush.bf16.msra.mxu0 0
    %651 = vmatpush.bf16.msra.mxu0 %v639
    %652 = vmatpush.bf16.msra.mxu0 %v638
    %653 = vmatpush.bf16.msra.mxu0 %v637
    %654 = vmatpush.bf16.msra.mxu0 %v636
    %655 = vmatmul.bf16.gmra.mxu0 %v645
    %v656 = vpop.f32.mrf.mxu0
    %v657 = vadd.f32 %v619, %v656
    %v658 = vpop.f32.mrf.mxu0
    %659 = vdwg.mxu0
    %vm660 = vcmp.ge.f32.partialorder %v657, 0.0
    %v661 = vmul.f32 %v657, 0.01
    %v662 = vsel %vm660, %v657, %v661
    %v664 = vsel %vm102, %v662, 0
    %v667 = vsel %vm102, %v35, 0
    %v670 = vsel %vm102, %v36, 0
    %672 = vmatpush.xpose.msra.mxu0 0.0
    %673 = vmatpush.xpose.msra.mxu0 0.0
    %674 = vmatpush.xpose.msra.mxu0 0.0
    %675 = vmatpush.xpose.msra.mxu0 0.0
    %676 = vmatpush.xpose.msra.mxu0 0.0
    %677 = vmatpush.xpose.msra.mxu0 0.0
    %678 = vmatpush.xpose.msra.mxu0 0.0
    %679 = vmatpush.xpose.msra.mxu0 0.0
    %680 = vmatpush.xpose.msra.mxu0 0.0
    %681 = vmatpush.xpose.msra.mxu0 0.0
    %682 = vmatpush.xpose.msra.mxu0 0.0
    %683 = vmatpush.xpose.msra.mxu0 0.0
    %684 = vmatpush.xpose.msra.mxu0 0.0
    %685 = vmatpush.xpose.msra.mxu0 0.0
    %686 = vmatpush.xpose.msra.mxu0 %v670
    %687 = vmatpush.xpose.msra.mxu0 %v667
    %688 = vmatmul.f32.gmra.mxu0 %v664
    %v689 = vpop.f32.mrf.mxu0
    %v690 = vadd.f32 0.0, %v689
    %691 = vdwg.mxu0
    %vm692 = vcmp.eq.s32.totalorder %v34, 0
    %694 = vset.pattern.permute.xlu0 0
    %695 = vperm.xlu0 %694, %v690
    %v696 = vpop.permute.xlu0 %695
    %v698 = vsel %vm692, %v696, 0.0
    %v699 = vadd.f32 %v698, 0.0
    %vm700 = vcmp.eq.s32.totalorder %v34, 1
    %701 = vset.pattern.permute.xlu0 1
    %702 = vperm.xlu0 %701, %v690
    %v703 = vpop.permute.xlu0 %702
    %v705 = vsel %vm700, %v703, 0.0
    %v706 = vadd.f32 %v699, %v705
    %vm707 = vcmp.eq.s32.totalorder %v34, 2
    %708 = vset.pattern.permute.xlu0 2
    %709 = vperm.xlu0 %708, %v690
    %v710 = vpop.permute.xlu0 %709
    %v712 = vsel %vm707, %v710, 0.0
    %v713 = vadd.f32 %v706, %v712
    %vm714 = vcmp.eq.s32.totalorder %v34, 3
    %715 = vset.pattern.permute.xlu0 3
    %716 = vperm.xlu0 %715, %v690
    %v717 = vpop.permute.xlu0 %716
    %v719 = vsel %vm714, %v717, 0.0
    %v720 = vadd.f32 %v713, %v719
    %vm721 = vcmp.eq.s32.totalorder %v34, 4
    %722 = vset.pattern.permute.xlu0 4
    %723 = vperm.xlu0 %722, %v690
    %v724 = vpop.permute.xlu0 %723
    %v726 = vsel %vm721, %v724, 0.0
    %v727 = vadd.f32 %v720, %v726
    %vm728 = vcmp.eq.s32.totalorder %v34, 5
    %729 = vset.pattern.permute.xlu0 5
    %730 = vperm.xlu0 %729, %v690
    %v731 = vpop.permute.xlu0 %730
    %v733 = vsel %vm728, %v731, 0.0
    %v734 = vadd.f32 %v727, %v733
    %vm735 = vcmp.eq.s32.totalorder %v34, 6
    %736 = vset.pattern.permute.xlu0 6
    %737 = vperm.xlu0 %736, %v690
    %v738 = vpop.permute.xlu0 %737
    %v740 = vsel %vm735, %v738, 0.0
    %v741 = vadd.f32 %v734, %v740
    %vm742 = vcmp.eq.s32.totalorder %v34, 7
    %743 = vset.pattern.permute.xlu0 7
    %744 = vperm.xlu0 %743, %v690
    %v745 = vpop.permute.xlu0 %744
    %v747 = vsel %vm742, %v745, 0.0
    %v748 = vadd.f32 %v741, %v747
    %vm749 = vcmp.eq.s32.totalorder %v34, 8
    %750 = vset.pattern.permute.xlu0 8
    %751 = vperm.xlu0 %750, %v690
    %v752 = vpop.permute.xlu0 %751
    %v754 = vsel %vm749, %v752, 0.0
    %v755 = vadd.f32 %v748, %v754
    %vm756 = vcmp.eq.s32.totalorder %v34, 9
    %757 = vset.pattern.permute.xlu0 9
    %758 = vperm.xlu0 %757, %v690
    %v759 = vpop.permute.xlu0 %758
    %v761 = vsel %vm756, %v759, 0.0
    %v762 = vadd.f32 %v755, %v761
    %vm763 = vcmp.eq.s32.totalorder %v34, 10
    %764 = vset.pattern.permute.xlu0 10
    %765 = vperm.xlu0 %764, %v690
    %v766 = vpop.permute.xlu0 %765
    %v768 = vsel %vm763, %v766, 0.0
    %v769 = vadd.f32 %v762, %v768
    %vm770 = vcmp.eq.s32.totalorder %v34, 11
    %771 = vset.pattern.permute.xlu0 11
    %772 = vperm.xlu0 %771, %v690
    %v773 = vpop.permute.xlu0 %772
    %v775 = vsel %vm770, %v773, 0.0
    %v776 = vadd.f32 %v769, %v775
    %vm777 = vcmp.eq.s32.totalorder %v34, 12
    %778 = vset.pattern.permute.xlu0 12
    %779 = vperm.xlu0 %778, %v690
    %v780 = vpop.permute.xlu0 %779
    %v782 = vsel %vm777, %v780, 0.0
    %v783 = vadd.f32 %v776, %v782
    %vm784 = vcmp.eq.s32.totalorder %v34, 13
    %785 = vset.pattern.permute.xlu0 13
    %786 = vperm.xlu0 %785, %v690
    %v787 = vpop.permute.xlu0 %786
    %v789 = vsel %vm784, %v787, 0.0
    %v790 = vadd.f32 %v783, %v789
    %vm791 = vcmp.eq.s32.totalorder %v34, 14
    %792 = vset.pattern.permute.xlu0 14
    %793 = vperm.xlu0 %792, %v690
    %v794 = vpop.permute.xlu0 %793
    %v796 = vsel %vm791, %v794, 0.0
    %v797 = vadd.f32 %v790, %v796
    %vm798 = vcmp.eq.s32.totalorder %v34, 15
    %799 = vset.pattern.permute.xlu0 15
    %800 = vperm.xlu0 %799, %v690
    %v801 = vpop.permute.xlu0 %800
    %v803 = vsel %vm798, %v801, 0.0
    %v804 = vadd.f32 %v797, %v803
    %vm805 = vcmp.gt.s32.totalorder %v34, 0
    %807 = vrot.lane.b32.xlu0 %v804, 8
    %v808 = vpop.permute.xlu0 %807
    %v810 = vsel %vm805, %v808, -99999.0
    %vm811 = vcmask 146512
    %v812 = vsel %vm811, %v810, -inf
    %813 = vmax.xlane.f32.xlu0 %v812
    %v814 = vpop.xlane.xlu0 %813
    %v815 = vsub.f32 %v810, %v814
    %v816 = vmul.f32 %v815, 1.442695
    %v817 = vpow.pop %v816
    %819 = vrot.lane.b32.xlu0 %v817, 118
    %v820 = vpop.permute.xlu0 %819
    %vm822 = vcmask 64512
    %v823 = vsel %vm822, %v820, 0.0
    %824 = vadd.xlane.f32.xlu0 %v823
    %v825 = vpop.xlane.xlu0 %824
    %v826 = vlog2.pop %v825
    %v827 = vmul.f32 %v826, 0.6931472
    %v828 = vsub.f32 %v815, %v827
    %830 = vrot.lane.b32.xlu0 %v828, 118
    %v831 = vpop.permute.xlu0 %830
    %834 = vrot.lane.b32.xlu0 %v245, 72
    %v835 = vpop.permute.xlu0 %834
    %838 = vrot.lane.b32.xlu0 %v395, 104
    %v839 = vpop.permute.xlu0 %838
    %841 = vrot.lane.b32.xlu0 %v545, 8
    %v842 = vpop.permute.xlu0 %841
    %845 = vrot.lane.b32.xlu0 %v239, 104
    %v846 = vpop.permute.xlu0 %845
    %849 = vrot.lane.b32.xlu0 %v389, 8
    %v850 = vpop.permute.xlu0 %849
    %853 = vrot.lane.b32.xlu0 %v539, 40
    %v854 = vpop.permute.xlu0 %853
    %856 = vrot.lane.b32.xlu0 %v81, 72
    %v857 = vpop.permute.xlu0 %856
    %v859 = vsel %vm822, %v831, %v835
    %vm860 = vcmask 326656
    %v861 = vsel %vm860, %v859, %v839
    %vm862 = vcmask 588800
    %v863 = vsel %vm862, %v861, %v842
    %vm864 = vcmask 850944
    %v865 = vsel %vm864, %v863, %v846
    %v866 = vsel %vm822, %v846, %v850
    %v867 = vsel %vm860, %v866, %v854
    %v868 = vsel %vm862, %v867, %v857
    %v869 = vsel %vm864, %v868, 0.0
    %870 = vst [vmem:[%s4] sm:$0xff] %v865
    %871 = vst [vmem:[%s4 + $0x8] sm:$0xff] %v869
    // Predicated region
    $region22: #{policy_forward.1} parent=1 // pred_check
      _
    $region23: #{policy_forward.1} parent=1 // pred_check_branch
      %873 = sbr.rel (0) target = $region25
    $region24: #{policy_forward.1} parent=1 // pred_region
      _
    $region25: #{policy_forward.1} parent=1 // pred_fallthru
      _
    // Predicated region
    $region26: #{policy_forward.1} parent=1 // pred_check
      _
    $region27: #{policy_forward.1} parent=1 // pred_check_branch
      %875 = sbr.rel (0) target = $region29
    $region28: #{policy_forward.1} parent=1 // pred_region
      _
    $region29: #{policy_forward.1} parent=1 // pred_fallthru
      _
    %876 = vsyncpa [#allocation3], 1

</llo_original>
